<compile_context>
chip_gen: v7x
topology: tpu7x:2x2x1
jax: 0.10.0
libtpu: 0.0.40
codegen_flags: <defaults>
</compile_context>

<pallas_src>
import functools

import jax
import jax.numpy as jnp
from jax import lax
from jax.experimental import pallas as pl
from jax.experimental.pallas import tpu as pltpu

BN_EPS = 1e-5
LN_EPS = 1e-5


def _fold_bn(gamma, beta, mean, var):
    s = gamma / jnp.sqrt(var + BN_EPS)
    return s, beta - mean * s


def _slab_layout(cp, cr):
    """Static column layout of the packed small-parameter slab (C, n_cols)."""
    cols = {
        'b1': 0, 'b2': 1, 'wmask': 2, 'ba2': 3,
        'wa1': 4, 'wa2t': 4 + cp,
        'sw1': 4 + 2 * cp, 'sw2t': 4 + 2 * cp + cr,
        'rowvec': 4 + 2 * cp + 2 * cr,   # rows 0/1/2 = gc_ba1 / ln_gamma / ln_beta
    }
    n_cols = cols['rowvec'] + cp
    return cols, n_cols


# ---------------------------------------------------------------------------
# Fused Pallas kernel (one grid step = one image)
# ---------------------------------------------------------------------------
def _make_block_kernel(H, W, C, cp, cr, stage4):
    HW = H * W
    TAPS = tuple((dh, dw) for dh in (-1, 0, 1) for dw in (-1, 0, 1))
    COL, _ = _slab_layout(cp, cr)

    def kernel(x_ref, w_ref, pp_ref, o_ref, col_ref):
        xc = x_ref[0]                                            # (C, HW) f32
        pp = pp_ref[...]                                         # (C, n_cols) f32

        # --- hoisted 3x3 'same' edge masks, shared by both convs.  They provide
        # the zero padding AND kill the wrap-around of the lane rolls below.
        r_idx = lax.broadcasted_iota(jnp.int32, (1, HW), 1)
        w_idx = r_idx % W
        h_ok = {-1: r_idx >= W, 0: None, 1: r_idx < (H - 1) * W}
        w_ok = {-1: w_idx >= 1, 0: None, 1: w_idx <= W - 2}
        masks = []
        for dh, dw in TAPS:
            m = h_ok[dh]
            if w_ok[dw] is not None:
                m = w_ok[dw] if m is None else (m & w_ok[dw])
            masks.append(m)

        def build_im2col(img):
            """(C, HW) f32 -> (9C, HW) bf16 im2col operand written into col_ref."""
            for t, (dh, dw) in enumerate(TAPS):
                s = dh * W + dw
                patch = img if s == 0 else pltpu.roll(img, shift=(-s) % HW, axis=1)
                if masks[t] is not None:
                    patch = jnp.where(masks[t], patch, 0.0)
                col_ref[t * C:(t + 1) * C, :] = patch.astype(jnp.bfloat16)

        # conv1 + folded bn1 + relu : one K=9C MXU matmul (bf16 in, f32 acc)
        build_im2col(xc)
        y1 = jnp.dot(w_ref[0:C, :], col_ref[...],
                     preferred_element_type=jnp.float32)
        y1 = jnp.maximum(y1 + pp[:, COL['b1']:COL['b1'] + 1], 0.0)     # (C, HW)

        # conv2 + folded bn2 (im2col scratch reused)
        build_im2col(y1)
        y2 = jnp.dot(w_ref[C:2 * C, :], col_ref[...],
                     preferred_element_type=jnp.float32)
        y2 = y2 + pp[:, COL['b2']:COL['b2'] + 1]                       # (C, HW)

        if stage4:
            wm = pp[:, COL['wmask']:COL['wmask'] + 1]                  # (C, 1)
            ba2c = pp[:, COL['ba2']:COL['ba2'] + 1]                    # (C, 1)
            wa1 = pp[:, COL['wa1']:COL['wa1'] + cp]                    # (C, cp)
            wa2t = pp[:, COL['wa2t']:COL['wa2t'] + cp]                 # (C, cp)
            sw1 = pp[:, COL['sw1']:COL['sw1'] + cr]                    # (C, cr)
            sw2t = pp[:, COL['sw2t']:COL['sw2t'] + cr]                 # (C, cr)
            rv = COL['rowvec']
            ba1 = pp[0:1, rv:rv + cp]                                  # (1, cp)
            lng = pp[1:2, rv:rv + cp]
            lnb = pp[2:3, rv:rv + cp]

            # --- ContextBlock 'att' spatial pooling (softmax-weighted context).
            # NOTE: conv_mask's bias is a single scalar logit shift, so it cancels
            # inside the softmax; this would NOT hold for a per-position bias.
            logits = jnp.sum(xc * wm, axis=0, keepdims=True)           # (1, HW)
            m = jnp.max(logits, axis=1, keepdims=True)
            pr = jnp.exp(logits - m)
            inv_den = pl.reciprocal(jnp.sum(pr, axis=1, keepdims=True), approx=True)
            ctx = jnp.sum(xc * pr, axis=1, keepdims=True) * inv_den    # (C, 1)

            # --- channel_add 1x1-conv MLP: C -> cp -> LayerNorm -> ReLU -> C
            h = jnp.sum(wa1 * ctx, axis=0, keepdims=True) + ba1        # (1, cp)
            mu = jnp.mean(h, axis=1, keepdims=True)
            var = jnp.mean((h - mu) ** 2, axis=1, keepdims=True)
            h = (h - mu) * lax.rsqrt(var + LN_EPS) * lng + lnb
            h = jnp.maximum(h, 0.0)
            add_c = jnp.sum(wa2t * h, axis=1, keepdims=True) + ba2c    # (C, 1)

            # --- SELayer: global avg-pool -> FC -> ReLU -> FC -> sigmoid
            pooled = jnp.mean(y2, axis=1, keepdims=True)               # (C, 1)
            sh = jnp.maximum(
                jnp.sum(sw1 * pooled, axis=0, keepdims=True), 0.0)     # (1, cr)
            sz = jnp.sum(sw2t * sh, axis=1, keepdims=True)             # (C, 1)
            se = pl.reciprocal(1.0 + jnp.exp(-sz), approx=True)
            out = jnp.maximum(y2 * se + xc + add_c, 0.0)
        else:
            out = jnp.maximum(y2 + xc, 0.0)

        o_ref[...] = out[None].astype(o_ref.dtype)

    return kernel


# ---------------------------------------------------------------------------
# BasicBlock forward (wrapper)
# ---------------------------------------------------------------------------
def basic_block_forward(x_nchw, p, *, stage4=True):
    """BasicBlock forward, eval-mode BN. x_nchw: (N, C, H, W) f32 -> (N, C, H, W)."""
    N, C, H, W = x_nchw.shape
    HW = H * W
    # Module defaults assumed: stride=1, downsample=None, inplanes == planes.
    assert p['conv1_w'].shape == (3, 3, C, C) and p['conv2_w'].shape == (3, 3, C, C)
    cp = p['gc_wa1'].shape[1] if stage4 else 1
    cr = p['se_w1'].shape[1] if stage4 else 1

    # TODO(synk): BatchNorm is eval-mode only (running stats folded into the conv
    # weights); the training-mode batch-statistics update is not implemented.
    s1, b1 = _fold_bn(p['bn1_gamma'], p['bn1_beta'], p['bn1_mean'], p['bn1_var'])
    s2, b2 = _fold_bn(p['bn2_gamma'], p['bn2_beta'], p['bn2_mean'], p['bn2_var'])

    # Fold BN scale into the conv weights; lay out as (Cout, 9*Cin) bf16, the LHS
    # of the transposed im2col matmul (K order = (kh, kw, cin)); both convs packed
    # into one operand.
    w1t = jnp.transpose((p['conv1_w'] * s1[None, None, None, :]).reshape(9 * C, C))
    w2t = jnp.transpose((p['conv2_w'] * s2[None, None, None, :]).reshape(9 * C, C))
    w12 = jnp.concatenate([w1t, w2t], axis=0).astype(jnp.bfloat16)     # (2C, 9C)

    # Pack all small parameters into one (C, n_cols) f32 slab (static offsets).
    COL, n_cols = _slab_layout(cp, cr)
    slab = jnp.zeros((C, n_cols), jnp.float32)
    slab = slab.at[:, COL['b1']].set(b1)
    slab = slab.at[:, COL['b2']].set(b2)
    if stage4:
        slab = slab.at[:, COL['wmask']].set(p['gc_wmask'])
        slab = slab.at[:, COL['ba2']].set(p['gc_ba2'])
        slab = slab.at[:, COL['wa1']:COL['wa1'] + cp].set(p['gc_wa1'])
        slab = slab.at[:, COL['wa2t']:COL['wa2t'] + cp].set(jnp.transpose(p['gc_wa2']))
        slab = slab.at[:, COL['sw1']:COL['sw1'] + cr].set(p['se_w1'])
        slab = slab.at[:, COL['sw2t']:COL['sw2t'] + cr].set(jnp.transpose(p['se_w2']))
        rv = COL['rowvec']
        slab = slab.at[0, rv:rv + cp].set(p['gc_ba1'])
        slab = slab.at[1, rv:rv + cp].set(p['gc_ln_g'])
        slab = slab.at[2, rv:rv + cp].set(p['gc_ln_b'])

    kernel = _make_block_kernel(H, W, C, cp, cr, stage4)
    full = lambda b: (0, 0)

    # TODO(synk): on single-TC chips (v5e/v6e) the batch could be folded into the
    # matmul RHS lane dim (one grid step, segmented GC/SE reductions); we keep
    # grid=(N,) "parallel" so both v7x TensorCores stay busy.
    out = pl.pallas_call(
        kernel,
        out_shape=jax.ShapeDtypeStruct((N, C, HW), x_nchw.dtype),
        grid=(N,),
        in_specs=[
            pl.BlockSpec((1, C, HW), lambda b: (b, 0, 0)),   # x, channels-major
            pl.BlockSpec((2 * C, 9 * C), full),              # conv1|conv2 weights (BN folded)
            pl.BlockSpec((C, n_cols), full),                 # packed small parameters
        ],
        out_specs=pl.BlockSpec((1, C, HW), lambda b: (b, 0, 0)),
        scratch_shapes=[pltpu.VMEM((9 * C, HW), jnp.bfloat16)],   # shared im2col buffer
        compiler_params=pltpu.CompilerParams(
            dimension_semantics=("parallel",)),
    )(x_nchw.reshape(N, C, HW), w12, slab)
    return out.reshape(N, C, H, W)


# ---------------------------------------------------------------------------
# Pure-JAX reference (same bf16-operand / f32-accumulate numerics for the convs)
# ---------------------------------------------------------------------------
def reference_forward(x_nchw, p, *, stage4=True):
    hi = lax.Precision.HIGHEST
    x = jnp.transpose(x_nchw, (0, 2, 3, 1))                    # NHWC, f32

    s1, b1 = _fold_bn(p['bn1_gamma'], p['bn1_beta'], p['bn1_mean'], p['bn1_var'])
    s2, b2 = _fold_bn(p['bn2_gamma'], p['bn2_beta'], p['bn2_mean'], p['bn2_var'])
    w1 = (p['conv1_w'] * s1[None, None, None, :]).astype(jnp.bfloat16)
    w2 = (p['conv2_w'] * s2[None, None, None, :]).astype(jnp.bfloat16)

    def conv(z, w):
        return lax.conv_general_dilated(
            z.astype(jnp.bfloat16), w, (1, 1), 'SAME',
            dimension_numbers=('NHWC', 'HWIO', 'NHWC'),
            preferred_element_type=jnp.float32)

    out = jnp.maximum(conv(x, w1) + b1, 0.0)
    out = conv(out, w2) + b2
    residual = x
    if stage4:
        N_, H_, W_, C_ = x.shape
        logits = jnp.einsum('nhwc,c->nhw', x, p['gc_wmask'],
                            precision=hi) + p['gc_bmask']
        pr = jax.nn.softmax(logits.reshape(N_, H_ * W_), axis=-1).reshape(N_, H_, W_)
        ctx = jnp.einsum('nhwc,nhw->nc', x, pr, precision=hi)
        h = jnp.dot(ctx, p['gc_wa1'], precision=hi) + p['gc_ba1']
        mu = jnp.mean(h, axis=-1, keepdims=True)
        var = jnp.mean((h - mu) ** 2, axis=-1, keepdims=True)
        h = (h - mu) * lax.rsqrt(var + LN_EPS) * p['gc_ln_g'] + p['gc_ln_b']
        h = jnp.maximum(h, 0.0)
        add_term = jnp.dot(h, p['gc_wa2'], precision=hi) + p['gc_ba2']
        residual = x + add_term[:, None, None, :]
        pooled = jnp.mean(out, axis=(1, 2))
        se = jax.nn.sigmoid(
            jnp.dot(jnp.maximum(jnp.dot(pooled, p['se_w1'], precision=hi), 0.0),
                    p['se_w2'], precision=hi))
        out = out * se[:, None, None, :]
    out = jnp.maximum(out + residual, 0.0)
    return jnp.transpose(out, (0, 3, 1, 2))


# ---------------------------------------------------------------------------
# Deterministic parameter init (synthetic; shapes follow the PyTorch __init__)
# ---------------------------------------------------------------------------
def init_params(key, inplanes, planes, reduction=16, ratio=0.25):
    cp = int(inplanes * ratio)           # ContextBlock bottleneck
    cr = planes // reduction             # SELayer bottleneck
    ks = jax.random.split(key, 19)
    n = jax.random.normal
    # Note: the real ContextBlock zero-inits its last 1x1 conv; we use nonzero
    # deterministic values so the compute path is actually exercised.
    return {
        'conv1_w': 0.1 * n(ks[0], (3, 3, inplanes, planes), jnp.float32),
        'conv2_w': 0.1 * n(ks[1], (3, 3, planes, planes), jnp.float32),
        'bn1_gamma': 1.0 + 0.1 * n(ks[2], (planes,), jnp.float32),
        'bn1_beta': 0.1 * n(ks[3], (planes,), jnp.float32),
        'bn1_mean': 0.1 * n(ks[4], (planes,), jnp.float32),
        'bn1_var': 1.0 + 0.1 * jnp.abs(n(ks[5], (planes,), jnp.float32)),
        'bn2_gamma': 1.0 + 0.1 * n(ks[6], (planes,), jnp.float32),
        'bn2_beta': 0.1 * n(ks[7], (planes,), jnp.float32),
        'bn2_mean': 0.1 * n(ks[8], (planes,), jnp.float32),
        'bn2_var': 1.0 + 0.1 * jnp.abs(n(ks[9], (planes,), jnp.float32)),
        'gc_wmask': 0.1 * n(ks[10], (inplanes,), jnp.float32),
        'gc_bmask': jnp.zeros((), jnp.float32),
        'gc_wa1': 0.1 * n(ks[11], (inplanes, cp), jnp.float32),
        'gc_ba1': 0.1 * n(ks[12], (cp,), jnp.float32),
        'gc_ln_g': 1.0 + 0.1 * n(ks[13], (cp,), jnp.float32),
        'gc_ln_b': 0.1 * n(ks[14], (cp,), jnp.float32),
        'gc_wa2': 0.1 * n(ks[15], (cp, inplanes), jnp.float32),
        'gc_ba2': 0.1 * n(ks[16], (inplanes,), jnp.float32),
        'se_w1': 0.1 * n(ks[17], (planes, cr), jnp.float32),
        'se_w2': 0.1 * n(ks[18], (cr, planes), jnp.float32),
    }


if __name__ == "__main__":
    key = jax.random.PRNGKey(0)
    kx, kp = jax.random.split(key)
    # inplanes == planes == 32, stride=1, downsample=None (module defaults),
    # stage4=True to also exercise SELayer + ContextBlock.
    N, C, H, W = 2, 32, 16, 16
    x = jax.random.normal(kx, (N, C, H, W), jnp.float32)
    params = init_params(kp, C, C)

    fwd = jax.jit(functools.partial(basic_block_forward, stage4=True))
    out = jax.block_until_ready(fwd(x, params))
    ref = jax.block_until_ready(reference_forward(x, params, stage4=True))

    assert out.shape == (N, C, H, W), out.shape
    err = float(jnp.max(jnp.abs(out - ref)))
    # Both paths run the convs with bf16 operands / f32 accumulation; residual
    # differences come from bf16 re-rounding of the layer-1 activation plus the
    # EUP approximate reciprocals and stay well below this bound (structural
    # bugs would show up at the 1e-1 level).
    if err > 5e-2:
        raise AssertionError(f"mismatch vs JAX reference: max abs err {err}")
    print("KERNEL_OK")
</pallas_src>

<mosaic_0001>
module attributes {stable_mosaic.version = 11 : i64} {
  func.func @kernel(%arg0: i32, %arg1: memref<1x32x256xf32, #tpu.memory_space<vmem>>, %arg2: memref<64x288xbf16, #tpu.memory_space<vmem>>, %arg3: memref<32x32xf32, #tpu.memory_space<vmem>>, %arg4: memref<1x32x256xf32, #tpu.memory_space<vmem>>, %arg5: memref<288x256xbf16, #tpu.memory_space<vmem>>) attributes {dimension_semantics = [#tpu.dimension_semantics<parallel>], iteration_bounds = array<i64: 2>, scalar_prefetch = 0 : i64, scratch_operands = 1 : i64, tpu.core_type = #tpu.core_type<tc>, window_params = [{transform_indices = @transform_0, window_bounds = array<i64: 1, 32, 256>}, {pipeline_mode = #tpu.pipeline_mode<synchronous>, transform_indices = @transform_1, window_bounds = array<i64: 64, 288>}, {pipeline_mode = #tpu.pipeline_mode<synchronous>, transform_indices = @transform_2, window_bounds = array<i64: 32, 32>}, {transform_indices = @transform_3, window_bounds = array<i64: 1, 32, 256>}]} {
    %c0 = arith.constant 0 : index
    %c0_0 = arith.constant 0 : index
    %c0_1 = arith.constant 0 : index
    %0 = vector.load %arg1[%c0, %c0_0, %c0_1] : memref<1x32x256xf32, #tpu.memory_space<vmem>>, vector<1x32x256xf32>
    %1 = vector.shape_cast %0 : vector<1x32x256xf32> to vector<32x256xf32>
    %c0_2 = arith.constant 0 : index
    %c0_3 = arith.constant 0 : index
    %2 = vector.load %arg3[%c0_2, %c0_3] : memref<32x32xf32, #tpu.memory_space<vmem>>, vector<32x32xf32>
    %3 = tpu.iota {dimensions = array<i32: 1>} : vector<1x256xi32>
    %c16_i32 = arith.constant 16 : i32
    %c0_i32 = arith.constant 0 : i32
    %4 = arith.cmpi eq, %c16_i32, %c0_i32 : i32
    %c1_i32 = arith.constant 1 : i32
    %5 = arith.select %4, %c1_i32, %c16_i32 : i32
    %6 = vector.broadcast %5 : i32 to vector<1x256xi32>
    %7 = arith.remsi %3, %6 : vector<1x256xi32>
    %c0_i32_4 = arith.constant 0 : i32
    %8 = vector.broadcast %c0_i32_4 : i32 to vector<1x256xi32>
    %9 = arith.cmpi ne, %7, %8 : vector<1x256xi32>
    %c0_i32_5 = arith.constant 0 : i32
    %10 = vector.broadcast %c0_i32_5 : i32 to vector<1x256xi32>
    %11 = arith.cmpi slt, %7, %10 : vector<1x256xi32>
    %c0_i32_6 = arith.constant 0 : i32
    %12 = arith.cmpi slt, %5, %c0_i32_6 : i32
    %13 = vector.broadcast %12 : i1 to vector<1x256xi1>
    %14 = vector.broadcast %13 : vector<1x256xi1> to vector<1x256xi1>
    %15 = arith.xori %11, %14 : vector<1x256xi1>
    %16 = arith.andi %15, %9 : vector<1x256xi1>
    %17 = vector.broadcast %5 : i32 to vector<1x256xi32>
    %18 = arith.addi %7, %17 : vector<1x256xi32>
    %19 = arith.select %16, %18, %7 : vector<1x256xi1>, vector<1x256xi32>
    %c16_i32_7 = arith.constant 16 : i32
    %20 = vector.broadcast %c16_i32_7 : i32 to vector<1x256xi32>
    %21 = arith.cmpi sge, %3, %20 : vector<1x256xi32>
    %c240_i32 = arith.constant 240 : i32
    %22 = vector.broadcast %c240_i32 : i32 to vector<1x256xi32>
    %23 = arith.cmpi slt, %3, %22 : vector<1x256xi32>
    %c1_i32_8 = arith.constant 1 : i32
    %24 = vector.broadcast %c1_i32_8 : i32 to vector<1x256xi32>
    %25 = arith.cmpi sge, %19, %24 : vector<1x256xi32>
    %c14_i32 = arith.constant 14 : i32
    %26 = vector.broadcast %c14_i32 : i32 to vector<1x256xi32>
    %27 = arith.cmpi sle, %19, %26 : vector<1x256xi32>
    %28 = arith.andi %21, %25 : vector<1x256xi1>
    %29 = arith.andi %21, %27 : vector<1x256xi1>
    %30 = arith.andi %23, %25 : vector<1x256xi1>
    %31 = arith.andi %23, %27 : vector<1x256xi1>
    %c17_i32 = arith.constant 17 : i32
    %32 = tpu.dynamic_rotate %1 by %c17_i32 dim 1 : vector<32x256xf32>, i32 -> vector<32x256xf32>
    %cst = arith.constant 0.000000e+00 : f32
    %33 = vector.shape_cast %28 : vector<1x256xi1> to vector<1x256xi1>
    %34 = vector.broadcast %33 : vector<1x256xi1> to vector<32x256xi1>
    %35 = vector.broadcast %cst : f32 to vector<32x256xf32>
    %36 = arith.select %34, %32, %35 : vector<32x256xi1>, vector<32x256xf32>
    %37 = arith.truncf %36 : vector<32x256xf32> to vector<32x256xbf16>
    %c0_9 = arith.constant 0 : index
    %c0_10 = arith.constant 0 : index
    %38 = vector.load %arg5[%c0_9, %c0_10] : memref<288x256xbf16, #tpu.memory_space<vmem>>, vector<32x256xbf16>
    tpu.vector_store %arg5[%c0_9, %c0_10], %37 {strides = array<i32>} : memref<288x256xbf16, #tpu.memory_space<vmem>>, vector<32x256xbf16>,
    %c16_i32_11 = arith.constant 16 : i32
    %39 = tpu.dynamic_rotate %1 by %c16_i32_11 dim 1 : vector<32x256xf32>, i32 -> vector<32x256xf32>
    %cst_12 = arith.constant 0.000000e+00 : f32
    %40 = vector.shape_cast %21 : vector<1x256xi1> to vector<1x256xi1>
    %41 = vector.broadcast %40 : vector<1x256xi1> to vector<32x256xi1>
    %42 = vector.broadcast %cst_12 : f32 to vector<32x256xf32>
    %43 = arith.select %41, %39, %42 : vector<32x256xi1>, vector<32x256xf32>
    %44 = arith.truncf %43 : vector<32x256xf32> to vector<32x256xbf16>
    %c32 = arith.constant 32 : index
    %c0_13 = arith.constant 0 : index
    %45 = vector.load %arg5[%c32, %c0_13] : memref<288x256xbf16, #tpu.memory_space<vmem>>, vector<32x256xbf16>
    tpu.vector_store %arg5[%c32, %c0_13], %44 {strides = array<i32>} : memref<288x256xbf16, #tpu.memory_space<vmem>>, vector<32x256xbf16>,
    %c15_i32 = arith.constant 15 : i32
    %46 = tpu.dynamic_rotate %1 by %c15_i32 dim 1 : vector<32x256xf32>, i32 -> vector<32x256xf32>
    %cst_14 = arith.constant 0.000000e+00 : f32
    %47 = vector.shape_cast %29 : vector<1x256xi1> to vector<1x256xi1>
    %48 = vector.broadcast %47 : vector<1x256xi1> to vector<32x256xi1>
    %49 = vector.broadcast %cst_14 : f32 to vector<32x256xf32>
    %50 = arith.select %48, %46, %49 : vector<32x256xi1>, vector<32x256xf32>
    %51 = arith.truncf %50 : vector<32x256xf32> to vector<32x256xbf16>
    %c64 = arith.constant 64 : index
    %c0_15 = arith.constant 0 : index
    %52 = vector.load %arg5[%c64, %c0_15] : memref<288x256xbf16, #tpu.memory_space<vmem>>, vector<32x256xbf16>
    tpu.vector_store %arg5[%c64, %c0_15], %51 {strides = array<i32>} : memref<288x256xbf16, #tpu.memory_space<vmem>>, vector<32x256xbf16>,
    %c1_i32_16 = arith.constant 1 : i32
    %53 = tpu.dynamic_rotate %1 by %c1_i32_16 dim 1 : vector<32x256xf32>, i32 -> vector<32x256xf32>
    %cst_17 = arith.constant 0.000000e+00 : f32
    %54 = vector.shape_cast %25 : vector<1x256xi1> to vector<1x256xi1>
    %55 = vector.broadcast %54 : vector<1x256xi1> to vector<32x256xi1>
    %56 = vector.broadcast %cst_17 : f32 to vector<32x256xf32>
    %57 = arith.select %55, %53, %56 : vector<32x256xi1>, vector<32x256xf32>
    %58 = arith.truncf %57 : vector<32x256xf32> to vector<32x256xbf16>
    %c96 = arith.constant 96 : index
    %c0_18 = arith.constant 0 : index
    %59 = vector.load %arg5[%c96, %c0_18] : memref<288x256xbf16, #tpu.memory_space<vmem>>, vector<32x256xbf16>
    tpu.vector_store %arg5[%c96, %c0_18], %58 {strides = array<i32>} : memref<288x256xbf16, #tpu.memory_space<vmem>>, vector<32x256xbf16>,
    %60 = arith.truncf %1 : vector<32x256xf32> to vector<32x256xbf16>
    %c128 = arith.constant 128 : index
    %c0_19 = arith.constant 0 : index
    %61 = vector.load %arg5[%c128, %c0_19] : memref<288x256xbf16, #tpu.memory_space<vmem>>, vector<32x256xbf16>
    tpu.vector_store %arg5[%c128, %c0_19], %60 {strides = array<i32>} : memref<288x256xbf16, #tpu.memory_space<vmem>>, vector<32x256xbf16>,
    %c255_i32 = arith.constant 255 : i32
    %62 = tpu.dynamic_rotate %1 by %c255_i32 dim 1 : vector<32x256xf32>, i32 -> vector<32x256xf32>
    %cst_20 = arith.constant 0.000000e+00 : f32
    %63 = vector.shape_cast %27 : vector<1x256xi1> to vector<1x256xi1>
    %64 = vector.broadcast %63 : vector<1x256xi1> to vector<32x256xi1>
    %65 = vector.broadcast %cst_20 : f32 to vector<32x256xf32>
    %66 = arith.select %64, %62, %65 : vector<32x256xi1>, vector<32x256xf32>
    %67 = arith.truncf %66 : vector<32x256xf32> to vector<32x256xbf16>
    %c160 = arith.constant 160 : index
    %c0_21 = arith.constant 0 : index
    %68 = vector.load %arg5[%c160, %c0_21] : memref<288x256xbf16, #tpu.memory_space<vmem>>, vector<32x256xbf16>
    tpu.vector_store %arg5[%c160, %c0_21], %67 {strides = array<i32>} : memref<288x256xbf16, #tpu.memory_space<vmem>>, vector<32x256xbf16>,
    %c241_i32 = arith.constant 241 : i32
    %69 = tpu.dynamic_rotate %1 by %c241_i32 dim 1 : vector<32x256xf32>, i32 -> vector<32x256xf32>
    %cst_22 = arith.constant 0.000000e+00 : f32
    %70 = vector.shape_cast %30 : vector<1x256xi1> to vector<1x256xi1>
    %71 = vector.broadcast %70 : vector<1x256xi1> to vector<32x256xi1>
    %72 = vector.broadcast %cst_22 : f32 to vector<32x256xf32>
    %73 = arith.select %71, %69, %72 : vector<32x256xi1>, vector<32x256xf32>
    %74 = arith.truncf %73 : vector<32x256xf32> to vector<32x256xbf16>
    %c192 = arith.constant 192 : index
    %c0_23 = arith.constant 0 : index
    %75 = vector.load %arg5[%c192, %c0_23] : memref<288x256xbf16, #tpu.memory_space<vmem>>, vector<32x256xbf16>
    tpu.vector_store %arg5[%c192, %c0_23], %74 {strides = array<i32>} : memref<288x256xbf16, #tpu.memory_space<vmem>>, vector<32x256xbf16>,
    %c240_i32_24 = arith.constant 240 : i32
    %76 = tpu.dynamic_rotate %1 by %c240_i32_24 dim 1 : vector<32x256xf32>, i32 -> vector<32x256xf32>
    %cst_25 = arith.constant 0.000000e+00 : f32
    %77 = vector.shape_cast %23 : vector<1x256xi1> to vector<1x256xi1>
    %78 = vector.broadcast %77 : vector<1x256xi1> to vector<32x256xi1>
    %79 = vector.broadcast %cst_25 : f32 to vector<32x256xf32>
    %80 = arith.select %78, %76, %79 : vector<32x256xi1>, vector<32x256xf32>
    %81 = arith.truncf %80 : vector<32x256xf32> to vector<32x256xbf16>
    %c224 = arith.constant 224 : index
    %c0_26 = arith.constant 0 : index
    %82 = vector.load %arg5[%c224, %c0_26] : memref<288x256xbf16, #tpu.memory_space<vmem>>, vector<32x256xbf16>
    tpu.vector_store %arg5[%c224, %c0_26], %81 {strides = array<i32>} : memref<288x256xbf16, #tpu.memory_space<vmem>>, vector<32x256xbf16>,
    %c239_i32 = arith.constant 239 : i32
    %83 = tpu.dynamic_rotate %1 by %c239_i32 dim 1 : vector<32x256xf32>, i32 -> vector<32x256xf32>
    %cst_27 = arith.constant 0.000000e+00 : f32
    %84 = vector.shape_cast %31 : vector<1x256xi1> to vector<1x256xi1>
    %85 = vector.broadcast %84 : vector<1x256xi1> to vector<32x256xi1>
    %86 = vector.broadcast %cst_27 : f32 to vector<32x256xf32>
    %87 = arith.select %85, %83, %86 : vector<32x256xi1>, vector<32x256xf32>
    %88 = arith.truncf %87 : vector<32x256xf32> to vector<32x256xbf16>
    %c256 = arith.constant 256 : index
    %c0_28 = arith.constant 0 : index
    %89 = vector.load %arg5[%c256, %c0_28] : memref<288x256xbf16, #tpu.memory_space<vmem>>, vector<32x256xbf16>
    tpu.vector_store %arg5[%c256, %c0_28], %88 {strides = array<i32>} : memref<288x256xbf16, #tpu.memory_space<vmem>>, vector<32x256xbf16>,
    %c0_29 = arith.constant 0 : index
    %c0_30 = arith.constant 0 : index
    %90 = vector.load %arg2[%c0_29, %c0_30] : memref<64x288xbf16, #tpu.memory_space<vmem>>, vector<32x288xbf16>
    %c0_31 = arith.constant 0 : index
    %c0_32 = arith.constant 0 : index
    %91 = vector.load %arg5[%c0_31, %c0_32] : memref<288x256xbf16, #tpu.memory_space<vmem>>, vector<288x256xbf16>
    %cst_33 = arith.constant dense<0.000000e+00> : vector<32x256xf32>
    %92 = tpu.matmul %90, %91, %cst_33 {dimension_numbers = #tpu.dot_dimension_numbers<[1], [0], [0], [1], [0, 0, 1, 1], [], []>} : vector<32x288xbf16>, vector<288x256xbf16>, vector<32x256xf32> -> vector<32x256xf32>
    %93 = vector.extract_strided_slice %2 {offsets = [0, 0], sizes = [32, 1], strides = [1, 1]} : vector<32x32xf32> to vector<32x1xf32>
    %94 = vector.broadcast %93 : vector<32x1xf32> to vector<32x256xf32>
    %95 = arith.addf %92, %94 : vector<32x256xf32>
    %cst_34 = arith.constant 0.000000e+00 : f32
    %96 = vector.broadcast %cst_34 : f32 to vector<32x256xf32>
    %97 = arith.maximumf %95, %96 : vector<32x256xf32>
    %c17_i32_35 = arith.constant 17 : i32
    %98 = tpu.dynamic_rotate %97 by %c17_i32_35 dim 1 : vector<32x256xf32>, i32 -> vector<32x256xf32>
    %cst_36 = arith.constant 0.000000e+00 : f32
    %99 = vector.shape_cast %28 : vector<1x256xi1> to vector<1x256xi1>
    %100 = vector.broadcast %99 : vector<1x256xi1> to vector<32x256xi1>
    %101 = vector.broadcast %cst_36 : f32 to vector<32x256xf32>
    %102 = arith.select %100, %98, %101 : vector<32x256xi1>, vector<32x256xf32>
    %103 = arith.truncf %102 : vector<32x256xf32> to vector<32x256xbf16>
    %c0_37 = arith.constant 0 : index
    %c0_38 = arith.constant 0 : index
    %104 = vector.load %arg5[%c0_37, %c0_38] : memref<288x256xbf16, #tpu.memory_space<vmem>>, vector<32x256xbf16>
    tpu.vector_store %arg5[%c0_37, %c0_38], %103 {strides = array<i32>} : memref<288x256xbf16, #tpu.memory_space<vmem>>, vector<32x256xbf16>,
    %c16_i32_39 = arith.constant 16 : i32
    %105 = tpu.dynamic_rotate %97 by %c16_i32_39 dim 1 : vector<32x256xf32>, i32 -> vector<32x256xf32>
    %cst_40 = arith.constant 0.000000e+00 : f32
    %106 = vector.shape_cast %21 : vector<1x256xi1> to vector<1x256xi1>
    %107 = vector.broadcast %106 : vector<1x256xi1> to vector<32x256xi1>
    %108 = vector.broadcast %cst_40 : f32 to vector<32x256xf32>
    %109 = arith.select %107, %105, %108 : vector<32x256xi1>, vector<32x256xf32>
    %110 = arith.truncf %109 : vector<32x256xf32> to vector<32x256xbf16>
    %c32_41 = arith.constant 32 : index
    %c0_42 = arith.constant 0 : index
    %111 = vector.load %arg5[%c32_41, %c0_42] : memref<288x256xbf16, #tpu.memory_space<vmem>>, vector<32x256xbf16>
    tpu.vector_store %arg5[%c32_41, %c0_42], %110 {strides = array<i32>} : memref<288x256xbf16, #tpu.memory_space<vmem>>, vector<32x256xbf16>,
    %c15_i32_43 = arith.constant 15 : i32
    %112 = tpu.dynamic_rotate %97 by %c15_i32_43 dim 1 : vector<32x256xf32>, i32 -> vector<32x256xf32>
    %cst_44 = arith.constant 0.000000e+00 : f32
    %113 = vector.shape_cast %29 : vector<1x256xi1> to vector<1x256xi1>
    %114 = vector.broadcast %113 : vector<1x256xi1> to vector<32x256xi1>
    %115 = vector.broadcast %cst_44 : f32 to vector<32x256xf32>
    %116 = arith.select %114, %112, %115 : vector<32x256xi1>, vector<32x256xf32>
    %117 = arith.truncf %116 : vector<32x256xf32> to vector<32x256xbf16>
    %c64_45 = arith.constant 64 : index
    %c0_46 = arith.constant 0 : index
    %118 = vector.load %arg5[%c64_45, %c0_46] : memref<288x256xbf16, #tpu.memory_space<vmem>>, vector<32x256xbf16>
    tpu.vector_store %arg5[%c64_45, %c0_46], %117 {strides = array<i32>} : memref<288x256xbf16, #tpu.memory_space<vmem>>, vector<32x256xbf16>,
    %c1_i32_47 = arith.constant 1 : i32
    %119 = tpu.dynamic_rotate %97 by %c1_i32_47 dim 1 : vector<32x256xf32>, i32 -> vector<32x256xf32>
    %cst_48 = arith.constant 0.000000e+00 : f32
    %120 = vector.shape_cast %25 : vector<1x256xi1> to vector<1x256xi1>
    %121 = vector.broadcast %120 : vector<1x256xi1> to vector<32x256xi1>
    %122 = vector.broadcast %cst_48 : f32 to vector<32x256xf32>
    %123 = arith.select %121, %119, %122 : vector<32x256xi1>, vector<32x256xf32>
    %124 = arith.truncf %123 : vector<32x256xf32> to vector<32x256xbf16>
    %c96_49 = arith.constant 96 : index
    %c0_50 = arith.constant 0 : index
    %125 = vector.load %arg5[%c96_49, %c0_50] : memref<288x256xbf16, #tpu.memory_space<vmem>>, vector<32x256xbf16>
    tpu.vector_store %arg5[%c96_49, %c0_50], %124 {strides = array<i32>} : memref<288x256xbf16, #tpu.memory_space<vmem>>, vector<32x256xbf16>,
    %126 = arith.truncf %97 : vector<32x256xf32> to vector<32x256xbf16>
    %c128_51 = arith.constant 128 : index
    %c0_52 = arith.constant 0 : index
    %127 = vector.load %arg5[%c128_51, %c0_52] : memref<288x256xbf16, #tpu.memory_space<vmem>>, vector<32x256xbf16>
    tpu.vector_store %arg5[%c128_51, %c0_52], %126 {strides = array<i32>} : memref<288x256xbf16, #tpu.memory_space<vmem>>, vector<32x256xbf16>,
    %c255_i32_53 = arith.constant 255 : i32
    %128 = tpu.dynamic_rotate %97 by %c255_i32_53 dim 1 : vector<32x256xf32>, i32 -> vector<32x256xf32>
    %cst_54 = arith.constant 0.000000e+00 : f32
    %129 = vector.shape_cast %27 : vector<1x256xi1> to vector<1x256xi1>
    %130 = vector.broadcast %129 : vector<1x256xi1> to vector<32x256xi1>
    %131 = vector.broadcast %cst_54 : f32 to vector<32x256xf32>
    %132 = arith.select %130, %128, %131 : vector<32x256xi1>, vector<32x256xf32>
    %133 = arith.truncf %132 : vector<32x256xf32> to vector<32x256xbf16>
    %c160_55 = arith.constant 160 : index
    %c0_56 = arith.constant 0 : index
    %134 = vector.load %arg5[%c160_55, %c0_56] : memref<288x256xbf16, #tpu.memory_space<vmem>>, vector<32x256xbf16>
    tpu.vector_store %arg5[%c160_55, %c0_56], %133 {strides = array<i32>} : memref<288x256xbf16, #tpu.memory_space<vmem>>, vector<32x256xbf16>,
    %c241_i32_57 = arith.constant 241 : i32
    %135 = tpu.dynamic_rotate %97 by %c241_i32_57 dim 1 : vector<32x256xf32>, i32 -> vector<32x256xf32>
    %cst_58 = arith.constant 0.000000e+00 : f32
    %136 = vector.shape_cast %30 : vector<1x256xi1> to vector<1x256xi1>
    %137 = vector.broadcast %136 : vector<1x256xi1> to vector<32x256xi1>
    %138 = vector.broadcast %cst_58 : f32 to vector<32x256xf32>
    %139 = arith.select %137, %135, %138 : vector<32x256xi1>, vector<32x256xf32>
    %140 = arith.truncf %139 : vector<32x256xf32> to vector<32x256xbf16>
    %c192_59 = arith.constant 192 : index
    %c0_60 = arith.constant 0 : index
    %141 = vector.load %arg5[%c192_59, %c0_60] : memref<288x256xbf16, #tpu.memory_space<vmem>>, vector<32x256xbf16>
    tpu.vector_store %arg5[%c192_59, %c0_60], %140 {strides = array<i32>} : memref<288x256xbf16, #tpu.memory_space<vmem>>, vector<32x256xbf16>,
    %c240_i32_61 = arith.constant 240 : i32
    %142 = tpu.dynamic_rotate %97 by %c240_i32_61 dim 1 : vector<32x256xf32>, i32 -> vector<32x256xf32>
    %cst_62 = arith.constant 0.000000e+00 : f32
    %143 = vector.shape_cast %23 : vector<1x256xi1> to vector<1x256xi1>
    %144 = vector.broadcast %143 : vector<1x256xi1> to vector<32x256xi1>
    %145 = vector.broadcast %cst_62 : f32 to vector<32x256xf32>
    %146 = arith.select %144, %142, %145 : vector<32x256xi1>, vector<32x256xf32>
    %147 = arith.truncf %146 : vector<32x256xf32> to vector<32x256xbf16>
    %c224_63 = arith.constant 224 : index
    %c0_64 = arith.constant 0 : index
    %148 = vector.load %arg5[%c224_63, %c0_64] : memref<288x256xbf16, #tpu.memory_space<vmem>>, vector<32x256xbf16>
    tpu.vector_store %arg5[%c224_63, %c0_64], %147 {strides = array<i32>} : memref<288x256xbf16, #tpu.memory_space<vmem>>, vector<32x256xbf16>,
    %c239_i32_65 = arith.constant 239 : i32
    %149 = tpu.dynamic_rotate %97 by %c239_i32_65 dim 1 : vector<32x256xf32>, i32 -> vector<32x256xf32>
    %cst_66 = arith.constant 0.000000e+00 : f32
    %150 = vector.shape_cast %31 : vector<1x256xi1> to vector<1x256xi1>
    %151 = vector.broadcast %150 : vector<1x256xi1> to vector<32x256xi1>
    %152 = vector.broadcast %cst_66 : f32 to vector<32x256xf32>
    %153 = arith.select %151, %149, %152 : vector<32x256xi1>, vector<32x256xf32>
    %154 = arith.truncf %153 : vector<32x256xf32> to vector<32x256xbf16>
    %c256_67 = arith.constant 256 : index
    %c0_68 = arith.constant 0 : index
    %155 = vector.load %arg5[%c256_67, %c0_68] : memref<288x256xbf16, #tpu.memory_space<vmem>>, vector<32x256xbf16>
    tpu.vector_store %arg5[%c256_67, %c0_68], %154 {strides = array<i32>} : memref<288x256xbf16, #tpu.memory_space<vmem>>, vector<32x256xbf16>,
    %c32_69 = arith.constant 32 : index
    %c0_70 = arith.constant 0 : index
    %156 = vector.load %arg2[%c32_69, %c0_70] : memref<64x288xbf16, #tpu.memory_space<vmem>>, vector<32x288xbf16>
    %c0_71 = arith.constant 0 : index
    %c0_72 = arith.constant 0 : index
    %157 = vector.load %arg5[%c0_71, %c0_72] : memref<288x256xbf16, #tpu.memory_space<vmem>>, vector<288x256xbf16>
    %cst_73 = arith.constant dense<0.000000e+00> : vector<32x256xf32>
    %158 = tpu.matmul %156, %157, %cst_73 {dimension_numbers = #tpu.dot_dimension_numbers<[1], [0], [0], [1], [0, 0, 1, 1], [], []>} : vector<32x288xbf16>, vector<288x256xbf16>, vector<32x256xf32> -> vector<32x256xf32>
    %159 = vector.extract_strided_slice %2 {offsets = [0, 1], sizes = [32, 1], strides = [1, 1]} : vector<32x32xf32> to vector<32x1xf32>
    %160 = vector.broadcast %159 : vector<32x1xf32> to vector<32x256xf32>
    %161 = arith.addf %158, %160 : vector<32x256xf32>
    %162 = vector.extract_strided_slice %2 {offsets = [0, 2], sizes = [32, 1], strides = [1, 1]} : vector<32x32xf32> to vector<32x1xf32>
    %163 = vector.extract_strided_slice %2 {offsets = [0, 3], sizes = [32, 1], strides = [1, 1]} : vector<32x32xf32> to vector<32x1xf32>
    %164 = vector.extract_strided_slice %2 {offsets = [0, 4], sizes = [32, 8], strides = [1, 1]} : vector<32x32xf32> to vector<32x8xf32>
    %165 = vector.extract_strided_slice %2 {offsets = [0, 12], sizes = [32, 8], strides = [1, 1]} : vector<32x32xf32> to vector<32x8xf32>
    %166 = vector.extract_strided_slice %2 {offsets = [0, 20], sizes = [32, 2], strides = [1, 1]} : vector<32x32xf32> to vector<32x2xf32>
    %167 = vector.extract_strided_slice %2 {offsets = [0, 22], sizes = [32, 2], strides = [1, 1]} : vector<32x32xf32> to vector<32x2xf32>
    %168 = vector.extract_strided_slice %2 {offsets = [0, 24], sizes = [1, 8], strides = [1, 1]} : vector<32x32xf32> to vector<1x8xf32>
    %169 = vector.extract_strided_slice %2 {offsets = [1, 24], sizes = [1, 8], strides = [1, 1]} : vector<32x32xf32> to vector<1x8xf32>
    %170 = vector.extract_strided_slice %2 {offsets = [2, 24], sizes = [1, 8], strides = [1, 1]} : vector<32x32xf32> to vector<1x8xf32>
    %171 = vector.broadcast %162 : vector<32x1xf32> to vector<32x256xf32>
    %172 = arith.mulf %1, %171 : vector<32x256xf32>
    %cst_74 = arith.constant dense<0.000000e+00> : vector<256xf32>
    %173 = vector.multi_reduction <add>, %172, %cst_74 [0] : vector<32x256xf32> to vector<256xf32>
    %174 = vector.shape_cast %173 : vector<256xf32> to vector<1x256xf32>
    %cst_75 = arith.constant dense<0xFF800000> : vector<1xf32>
    %175 = vector.multi_reduction <maximumf>, %174, %cst_75 [1] : vector<1x256xf32> to vector<1xf32>
    %176 = vector.shape_cast %175 : vector<1xf32> to vector<1x1xf32>
    %177 = vector.broadcast %176 : vector<1x1xf32> to vector<1x256xf32>
    %178 = arith.subf %174, %177 : vector<1x256xf32>
    %179 = math.exp %178 : vector<1x256xf32>
    %cst_76 = arith.constant dense<0.000000e+00> : vector<1xf32>
    %180 = vector.multi_reduction <add>, %179, %cst_76 [1] : vector<1x256xf32> to vector<1xf32>
    %181 = vector.shape_cast %180 : vector<1xf32> to vector<1x1xf32>
    %182 = tpu.reciprocal %181 {approx = true} : vector<1x1xf32> -> vector<1x1xf32>
    %183 = vector.broadcast %179 : vector<1x256xf32> to vector<32x256xf32>
    %184 = arith.mulf %1, %183 : vector<32x256xf32>
    %cst_77 = arith.constant dense<0.000000e+00> : vector<32xf32>
    %185 = vector.multi_reduction <add>, %184, %cst_77 [1] : vector<32x256xf32> to vector<32xf32>
    %186 = vector.shape_cast %185 : vector<32xf32> to vector<32x1xf32>
    %187 = vector.broadcast %182 : vector<1x1xf32> to vector<32x1xf32>
    %188 = arith.mulf %186, %187 : vector<32x1xf32>
    %189 = vector.broadcast %188 : vector<32x1xf32> to vector<32x8xf32>
    %190 = arith.mulf %164, %189 : vector<32x8xf32>
    %cst_78 = arith.constant dense<0.000000e+00> : vector<8xf32>
    %191 = vector.multi_reduction <add>, %190, %cst_78 [0] : vector<32x8xf32> to vector<8xf32>
    %192 = vector.shape_cast %191 : vector<8xf32> to vector<1x8xf32>
    %193 = arith.addf %192, %168 : vector<1x8xf32>
    %cst_79 = arith.constant dense<0.000000e+00> : vector<1xf32>
    %194 = vector.multi_reduction <add>, %193, %cst_79 [1] : vector<1x8xf32> to vector<1xf32>
    %195 = vector.shape_cast %194 : vector<1xf32> to vector<1x1xf32>
    %cst_80 = arith.constant 8.000000e+00 : f32
    %196 = vector.broadcast %cst_80 : f32 to vector<1x1xf32>
    %197 = arith.divf %195, %196 : vector<1x1xf32>
    %198 = vector.broadcast %197 : vector<1x1xf32> to vector<1x8xf32>
    %199 = arith.subf %193, %198 : vector<1x8xf32>
    %200 = arith.mulf %199, %199 : vector<1x8xf32>
    %cst_81 = arith.constant dense<0.000000e+00> : vector<1xf32>
    %201 = vector.multi_reduction <add>, %200, %cst_81 [1] : vector<1x8xf32> to vector<1xf32>
    %202 = vector.shape_cast %201 : vector<1xf32> to vector<1x1xf32>
    %cst_82 = arith.constant 8.000000e+00 : f32
    %203 = vector.broadcast %cst_82 : f32 to vector<1x1xf32>
    %204 = arith.divf %202, %203 : vector<1x1xf32>
    %205 = vector.broadcast %197 : vector<1x1xf32> to vector<1x8xf32>
    %206 = arith.subf %193, %205 : vector<1x8xf32>
    %cst_83 = arith.constant 9.99999974E-6 : f32
    %207 = vector.broadcast %cst_83 : f32 to vector<1x1xf32>
    %208 = arith.addf %204, %207 : vector<1x1xf32>
    %209 = math.rsqrt %208 : vector<1x1xf32>
    %210 = vector.broadcast %209 : vector<1x1xf32> to vector<1x8xf32>
    %211 = arith.mulf %206, %210 : vector<1x8xf32>
    %212 = arith.mulf %211, %169 : vector<1x8xf32>
    %213 = arith.addf %212, %170 : vector<1x8xf32>
    %cst_84 = arith.constant 0.000000e+00 : f32
    %214 = vector.broadcast %cst_84 : f32 to vector<1x8xf32>
    %215 = arith.maximumf %213, %214 : vector<1x8xf32>
    %216 = vector.broadcast %215 : vector<1x8xf32> to vector<32x8xf32>
    %217 = arith.mulf %165, %216 : vector<32x8xf32>
    %cst_85 = arith.constant dense<0.000000e+00> : vector<32xf32>
    %218 = vector.multi_reduction <add>, %217, %cst_85 [1] : vector<32x8xf32> to vector<32xf32>
    %219 = vector.shape_cast %218 : vector<32xf32> to vector<32x1xf32>
    %220 = arith.addf %219, %163 : vector<32x1xf32>
    %cst_86 = arith.constant dense<0.000000e+00> : vector<32xf32>
    %221 = vector.multi_reduction <add>, %161, %cst_86 [1] : vector<32x256xf32> to vector<32xf32>
    %222 = vector.shape_cast %221 : vector<32xf32> to vector<32x1xf32>
    %cst_87 = arith.constant 2.560000e+02 : f32
    %223 = vector.broadcast %cst_87 : f32 to vector<32x1xf32>
    %224 = arith.divf %222, %223 : vector<32x1xf32>
    %225 = vector.broadcast %224 : vector<32x1xf32> to vector<32x2xf32>
    %226 = arith.mulf %166, %225 : vector<32x2xf32>
    %cst_88 = arith.constant dense<0.000000e+00> : vector<2xf32>
    %227 = vector.multi_reduction <add>, %226, %cst_88 [0] : vector<32x2xf32> to vector<2xf32>
    %228 = vector.shape_cast %227 : vector<2xf32> to vector<1x2xf32>
    %cst_89 = arith.constant 0.000000e+00 : f32
    %229 = vector.broadcast %cst_89 : f32 to vector<1x2xf32>
    %230 = arith.maximumf %228, %229 : vector<1x2xf32>
    %231 = vector.broadcast %230 : vector<1x2xf32> to vector<32x2xf32>
    %232 = arith.mulf %167, %231 : vector<32x2xf32>
    %cst_90 = arith.constant dense<0.000000e+00> : vector<32xf32>
    %233 = vector.multi_reduction <add>, %232, %cst_90 [1] : vector<32x2xf32> to vector<32xf32>
    %234 = vector.shape_cast %233 : vector<32xf32> to vector<32x1xf32>
    %cst_91 = arith.constant 0.000000e+00 : f32
    %235 = vector.broadcast %cst_91 : f32 to vector<32x1xf32>
    %236 = arith.subf %235, %234 : vector<32x1xf32>
    %237 = math.exp %236 : vector<32x1xf32>
    %cst_92 = arith.constant 1.000000e+00 : f32
    %238 = vector.broadcast %cst_92 : f32 to vector<32x1xf32>
    %239 = arith.addf %238, %237 : vector<32x1xf32>
    %240 = tpu.reciprocal %239 {approx = true} : vector<32x1xf32> -> vector<32x1xf32>
    %241 = vector.broadcast %240 : vector<32x1xf32> to vector<32x256xf32>
    %242 = arith.mulf %161, %241 : vector<32x256xf32>
    %243 = arith.addf %242, %1 : vector<32x256xf32>
    %244 = vector.broadcast %220 : vector<32x1xf32> to vector<32x256xf32>
    %245 = arith.addf %243, %244 : vector<32x256xf32>
    %cst_93 = arith.constant 0.000000e+00 : f32
    %246 = vector.broadcast %cst_93 : f32 to vector<32x256xf32>
    %247 = arith.maximumf %245, %246 : vector<32x256xf32>
    %248 = vector.shape_cast %247 : vector<32x256xf32> to vector<1x32x256xf32>
    %c0_94 = arith.constant 0 : index
    %c0_95 = arith.constant 0 : index
    %c0_96 = arith.constant 0 : index
    %249 = vector.load %arg4[%c0_94, %c0_95, %c0_96] : memref<1x32x256xf32, #tpu.memory_space<vmem>>, vector<1x32x256xf32>
    tpu.vector_store %arg4[%c0_94, %c0_95, %c0_96], %248 {strides = array<i32>} : memref<1x32x256xf32, #tpu.memory_space<vmem>>, vector<1x32x256xf32>,
    return
  }
  func.func @transform_0(%arg0: i32) -> (i32, i32, i32) {
    %c0_i32 = arith.constant 0 : i32
    %c0_i32_0 = arith.constant 0 : i32
    %c0_i32_1 = arith.constant 0 : i32
    return %arg0, %c0_i32, %c0_i32_0 : i32, i32, i32
  }
  func.func @transform_1(%arg0: i32) -> (i32, i32) {
    %c0_i32 = arith.constant 0 : i32
    %c0_i32_0 = arith.constant 0 : i32
    %c0_i32_1 = arith.constant 0 : i32
    return %c0_i32, %c0_i32_0 : i32, i32
  }
  func.func @transform_2(%arg0: i32) -> (i32, i32) {
    %c0_i32 = arith.constant 0 : i32
    %c0_i32_0 = arith.constant 0 : i32
    %c0_i32_1 = arith.constant 0 : i32
    return %c0_i32, %c0_i32_0 : i32, i32
  }
  func.func @transform_3(%arg0: i32) -> (i32, i32, i32) {
    %c0_i32 = arith.constant 0 : i32
    %c0_i32_0 = arith.constant 0 : i32
    %c0_i32_1 = arith.constant 0 : i32
    return %arg0, %c0_i32, %c0_i32_0 : i32, i32, i32
  }
}

</mosaic_0001>

<llo_original>
// kernel: basic_block_forward.1
$region0: #{basic_block_forward.1}
  #allocation0 [shape = 'u32[]', space=smem, size = 0x4, offset = 0x4, fixed_abs, tag = 'smem constant byte address 0x4 - core index']
  #allocation1 [shape = 'u32[144,128]{1,0:T(1,128)}', space=vmem, size = 0x12000, scoped, tag = 'internal scratch']
  #allocation2 [shape = 'bf16[288,256]{1,0:T(16,128)(2,1)}', space=vmem, size = 0x24000, scoped, tag = 'scratch operand']
  %s0 = inlined_call_operand.vmem [shape: f32[2,32,256], index: 0, kind: input, shape index: {}]
  %s1 = inlined_call_operand.vmem [shape: bf16[64,288], index: 1, kind: input, shape index: {}]
  %s2 = inlined_call_operand.vmem [shape: f32[32,32], index: 2, kind: input, shape index: {}]
  %s3 = inlined_call_operand.vmem [shape: f32[2,32,256], index: 3, kind: output, shape index: {}]
  %s4 = sld [smem:[#allocation0]]
  $region45: #{basic_block_forward.1} parent=0
    _
  %s6 = ssub.s32 1, %s4
  %s7 = scalar_select 0, %s6, %s4
  loop: start=0, step=1, limit=4
  $region2: #{basic_block_forward.1} parent=0 // loop_pre_header
    _
  $region3: #{basic_block_forward.1} parent=0 // loop_header
    %s9 = sphi 0, %s13
    %p10 = scmp.ge.s32.totalorder %s9, 4
    %s19 = sphi 0, %s21
    %s22 = sphi 0, %s19
    %s23 = sphi 0, %s22
    %s39 = sphi 0, %s23
    %s43 = sphi 0, %s43
    %s45 = sphi 0, %s43
    %s46 = sphi 0, %s45
    %s60 = sphi 0, %s46
    %s64 = sphi 0, %s64
    %s66 = sphi 0, %s64
    %s67 = sphi 0, %s66
    %s81 = sphi 0, %s67
    %s87 = sphi 0, %s89
    %s90 = sphi 0, %s87
    %s91 = sphi 0, %s90
    %s107 = sphi 0, %s91
  $region4: #{basic_block_forward.1} parent=0 // loop_header_branch
    %12 = sbr.rel (%p10) target = $region8
  $region5: #{basic_block_forward.1} parent=0 // loop_body
    %s14 = ssub.s32 %s9, 1
    %s15 = ssub.s32 %s9, 2
    %s16 = sadd.s32 %s9, 1
    %s17 = ssub.s32 %s9, %s16
    %p18 = scmp.eq.s32.totalorder %s17, 0
    %s20 = sadd.s32 %s19, 1
    %s21 = scalar_select %p18, %s19, %s20
    %p24 = pneg %p18
    %p25 = scmp.eq.s32.totalorder %s9, 1
    %p26 = por %p24, %p25
    %p27 = scmp.ne.s32.totalorder %s19, %s22
    %p28 = scmp.eq.s32.totalorder %s9, 0
    %p29 = por %p27, %p28
    %p30 = scmp.ne.s32.totalorder %s19, %s22
    %p31 = scmp.eq.s32.totalorder %s14, 1
    %p32 = por %p30, %p31
    %p33 = scmp.ne.s32.totalorder %s22, %s23
    %p34 = scmp.eq.s32.totalorder %s14, 0
    %p35 = por %p33, %p34
    %p36 = scmp.ne.s32.totalorder %s22, %s23
    %p37 = scmp.eq.s32.totalorder %s15, 1
    %p38 = por %p36, %p37
    %p40 = scmp.ne.s32.totalorder %s23, %s39
    %p41 = scmp.eq.s32.totalorder %s15, 0
    %p42 = por %p40, %p41
    %s44 = sadd.s32 %s43, 1
    %p47 = scmp.eq.s32.totalorder %s9, 1
    %p48 = scmp.ne.s32.totalorder %s43, %s45
    %p49 = scmp.eq.s32.totalorder %s9, 0
    %p50 = por %p48, %p49
    %p51 = scmp.ne.s32.totalorder %s43, %s45
    %p52 = scmp.eq.s32.totalorder %s14, 1
    %p53 = por %p51, %p52
    %p54 = scmp.ne.s32.totalorder %s45, %s46
    %p55 = scmp.eq.s32.totalorder %s14, 0
    %p56 = por %p54, %p55
    %p57 = scmp.ne.s32.totalorder %s45, %s46
    %p58 = scmp.eq.s32.totalorder %s15, 1
    %p59 = por %p57, %p58
    %p61 = scmp.ne.s32.totalorder %s46, %s60
    %p62 = scmp.eq.s32.totalorder %s15, 0
    %p63 = por %p61, %p62
    %s65 = sadd.s32 %s64, 1
    %p68 = scmp.eq.s32.totalorder %s9, 1
    %p69 = scmp.ne.s32.totalorder %s64, %s66
    %p70 = scmp.eq.s32.totalorder %s9, 0
    %p71 = por %p69, %p70
    %p72 = scmp.ne.s32.totalorder %s64, %s66
    %p73 = scmp.eq.s32.totalorder %s14, 1
    %p74 = por %p72, %p73
    %p75 = scmp.ne.s32.totalorder %s66, %s67
    %p76 = scmp.eq.s32.totalorder %s14, 0
    %p77 = por %p75, %p76
    %p78 = scmp.ne.s32.totalorder %s66, %s67
    %p79 = scmp.eq.s32.totalorder %s15, 1
    %p80 = por %p78, %p79
    %p82 = scmp.ne.s32.totalorder %s67, %s81
    %p83 = scmp.eq.s32.totalorder %s15, 0
    %p84 = por %p82, %p83
    %s85 = ssub.s32 %s9, %s16
    %p86 = scmp.eq.s32.totalorder %s85, 0
    %s88 = sadd.s32 %s87, 1
    %s89 = scalar_select %p86, %s87, %s88
    %p92 = pneg %p86
    %p93 = scmp.eq.s32.totalorder %s9, 1
    %p94 = por %p92, %p93
    %p95 = scmp.ne.s32.totalorder %s87, %s90
    %p96 = scmp.eq.s32.totalorder %s9, 0
    %p97 = por %p95, %p96
    %p98 = scmp.ne.s32.totalorder %s87, %s90
    %p99 = scmp.eq.s32.totalorder %s14, 1
    %p100 = por %p98, %p99
    %p101 = scmp.ne.s32.totalorder %s90, %s91
    %p102 = scmp.eq.s32.totalorder %s14, 0
    %p103 = por %p101, %p102
    %p104 = scmp.ne.s32.totalorder %s90, %s91
    %p105 = scmp.eq.s32.totalorder %s15, 1
    %p106 = por %p104, %p105
    %p108 = scmp.ne.s32.totalorder %s91, %s107
    %p109 = scmp.eq.s32.totalorder %s15, 0
    %p110 = por %p108, %p109
    %p111 = scmp.le.s32.totalorder 1, %s9
    %p112 = scmp.lt.s32.totalorder %s9, 3
    %p113 = pnand %p111, %p112
    %p114 = pneg %p113
    // Predicated region
    $region9: #{basic_block_forward.1} parent=5 // pred_check
      _
    $region10: #{basic_block_forward.1} parent=5 // pred_check_branch
      %116 = sbr.rel (%p113) target = $region12
    $region11: #{basic_block_forward.1} parent=5 // pred_region
      %s117 = ssub.s32 %s9, 1
      // Predicated region
      $region13: #{basic_block_forward.1} parent=11 // pred_check
        %p118 = pneg %p56
      $region14: #{basic_block_forward.1} parent=11 // pred_check_branch
        %120 = sbr.rel (%p118) target = $region16
      $region15: #{basic_block_forward.1} parent=11 // pred_region
        _
      $region16: #{basic_block_forward.1} parent=11 // pred_fallthru
        _
      // Predicated region
      $region17: #{basic_block_forward.1} parent=11 // pred_check
        %p121 = pneg %p77
      $region18: #{basic_block_forward.1} parent=11 // pred_check_branch
        %123 = sbr.rel (%p121) target = $region20
      $region19: #{basic_block_forward.1} parent=11 // pred_region
        _
      $region20: #{basic_block_forward.1} parent=11 // pred_fallthru
        _
    $region12: #{basic_block_forward.1} parent=5 // pred_fallthru
      _
    %p124 = scmp.lt.s32.totalorder %s9, 2
    // Predicated region
    $region21: #{basic_block_forward.1} parent=5 // pred_check
      %p125 = pneg %p124
    $region22: #{basic_block_forward.1} parent=5 // pred_check_branch
      %127 = sbr.rel (%p125) target = $region24
    $region23: #{basic_block_forward.1} parent=5 // pred_region
      // Predicated region
      $region25: #{basic_block_forward.1} parent=23 // pred_check
        %p128 = pneg %p29
      $region26: #{basic_block_forward.1} parent=23 // pred_check_branch
        %130 = sbr.rel (%p128) target = $region28
      $region27: #{basic_block_forward.1} parent=23 // pred_region
        %p131 = scmp.lt.s32.totalorder %s9, 1
        %s132 = scalar_select %p131, %s9, 1
        %s133 = smul.addr %s132, 8
        %s134 = smul.addr %s133, 8
        %s135 = scalar_lea.vmem %s0, %s134
      $region28: #{basic_block_forward.1} parent=23 // pred_fallthru
        _
    $region24: #{basic_block_forward.1} parent=5 // pred_fallthru
      _
    %p136 = scmp.le.s32.totalorder 1, %s9
    %p137 = scmp.lt.s32.totalorder %s9, 3
    %p138 = pnand %p136, %p137
    %p139 = pneg %p138
    // Predicated region
    $region29: #{basic_block_forward.1} parent=5 // pred_check
      _
    $region30: #{basic_block_forward.1} parent=5 // pred_check_branch
      %141 = sbr.rel (%p138) target = $region32
    $region31: #{basic_block_forward.1} parent=5 // pred_region
      %s142 = ssub.s32 %s9, 1
      %p143 = scmp.lt.s32.totalorder %s14, 1
      %s144 = scalar_select %p143, %s14, 1
      %s145 = smul.addr %s144, 8
      %s146 = smul.addr %s145, 8
      %s147 = scalar_lea.vmem %s0, %s146
      %p148 = pneg %p35
      %p149 = pneg %p32
      %p150 = pneg %p56
      %p151 = pneg %p53
      %p152 = pneg %p77
      %p153 = pneg %p74
      %p154 = pneg %p103
      %p155 = pneg %p100
      %p156 = scmp.lt.s32.totalorder %s14, 1
      %s157 = scalar_select %p156, %s14, 1
      %s158 = smul.addr %s157, 8
      %s159 = smul.addr %s158, 8
      %s160 = scalar_lea.vmem %s3, %s159
      %p161 = scmp.lt.s32.totalorder %s14, 1
      %s162 = scalar_select %p161, %s14, 1
      %s163 = smul.addr %s162, 8
      %s164 = smul.addr %s163, 8
      %s165 = scalar_lea.vmem %s0, %s164
      %p166 = scmp.lt.s32.totalorder %s14, 1
      %s167 = scalar_select %p166, %s14, 1
      %s168 = smul.addr %s167, 8
      %s169 = smul.addr %s168, 8
      %s170 = scalar_lea.vmem %s3, %s169
      %v172 = vld [vmem:[%s165] sm:$0xff]
      %v173 = vld [vmem:[%s165 + $0x8] sm:$0xff]
      %v174 = vld [vmem:[%s165 + $0x10] sm:$0xff]
      %v175 = vld [vmem:[%s165 + $0x18] sm:$0xff]
      %v176 = vld [vmem:[%s165 + $0x20] sm:$0xff]
      %v177 = vld [vmem:[%s165 + $0x28] sm:$0xff]
      %v178 = vld [vmem:[%s165 + $0x30] sm:$0xff]
      %v179 = vld [vmem:[%s165 + $0x38] sm:$0xff]
      %v180 = vld [vmem:[%s2] sm:$0xff]
      %v181 = vld [vmem:[%s2 + $0x8] sm:$0xff]
      %v182 = vld [vmem:[%s2 + $0x10] sm:$0xff]
      %v183 = vld [vmem:[%s2 + $0x18] sm:$0xff]
      %v184 = vlaneseq
      %v185 = vand.u32 %v184, 127
      %v186 = vadd.s32 %v185, 128
      %vm187 = vcmp.lt.s32.totalorder %v185, 0
      %v188 = vsub.s32 0, %v185
      %v189 = vsel %vm187, %v188, %v185
      %v190 = vshrl.u32 %v189, 4
      %v191 = vand.u32 %v189, 15
      %v192 = vsub.s32 0, %v191
      %v193 = vsel %vm187, %v192, %v191
      %vm194 = vcmp.lt.s32.totalorder %v186, 0
      %v195 = vsub.s32 0, %v186
      %v196 = vsel %vm194, %v195, %v186
      %v197 = vshrl.u32 %v196, 4
      %v198 = vand.u32 %v196, 15
      %v199 = vsub.s32 0, %v198
      %v200 = vsel %vm194, %v199, %v198
      %vm201 = vcmp.ne.s32.totalorder %v193, 0
      %vm202 = vcmp.ne.s32.totalorder %v200, 0
      %vm203 = vcmp.lt.s32.totalorder %v193, 0
      %vm204 = vcmp.lt.s32.totalorder %v200, 0
      %vm205 = vmand %vm203, %vm201
      %vm206 = vmand %vm204, %vm202
      %v207 = vadd.s32 %v193, 16
      %v208 = vadd.s32 %v200, 16
      %v209 = vsel %vm205, %v207, %v193
      %v210 = vsel %vm206, %v208, %v200
      %vm211 = vcmp.ge.s32.totalorder %v185, 16
      %vm212 = vcmp.ge.s32.totalorder %v186, 16
      %vm213 = vcmp.lt.s32.totalorder %v185, 240
      %vm214 = vcmp.lt.s32.totalorder %v186, 240
      %vm215 = vcmp.ge.s32.totalorder %v209, 1
      %vm216 = vcmp.ge.s32.totalorder %v210, 1
      %vm217 = vcmp.le.s32.totalorder %v209, 14
      %vm218 = vcmp.le.s32.totalorder %v210, 14
      %vm219 = vmand %vm211, %vm215
      %vm220 = vmand %vm212, %vm216
      %vm221 = vmand %vm211, %vm217
      %vm222 = vmand %vm212, %vm218
      %vm223 = vmand %vm213, %vm215
      %vm224 = vmand %vm214, %vm216
      %vm225 = vmand %vm213, %vm217
      %vm226 = vmand %vm214, %vm218
      %227 = vrot.lane.b32.xlu0 %v172, 17
      %v228 = vpop.permute.xlu0 %227
      %229 = vrot.lane.b32.xlu0 %v174, 17
      %v230 = vpop.permute.xlu0 %229
      %231 = vrot.lane.b32.xlu0 %v176, 17
      %v232 = vpop.permute.xlu0 %231
      %233 = vrot.lane.b32.xlu0 %v178, 17
      %v234 = vpop.permute.xlu0 %233
      %235 = vrot.lane.b32.xlu0 %v173, 17
      %v236 = vpop.permute.xlu0 %235
      %237 = vrot.lane.b32.xlu0 %v175, 17
      %v238 = vpop.permute.xlu0 %237
      %239 = vrot.lane.b32.xlu0 %v177, 17
      %v240 = vpop.permute.xlu0 %239
      %241 = vrot.lane.b32.xlu0 %v179, 17
      %v242 = vpop.permute.xlu0 %241
      %vm243 = vcmp.lt.s32.totalorder %v185, 17
      %v244 = vsel %vm243, %v228, %v236
      %v245 = vsel %vm243, %v230, %v238
      %v246 = vsel %vm243, %v232, %v240
      %v247 = vsel %vm243, %v234, %v242
      %v248 = vsel %vm243, %v236, %v228
      %v249 = vsel %vm243, %v238, %v230
      %v250 = vsel %vm243, %v240, %v232
      %v251 = vsel %vm243, %v242, %v234
      %v252 = vsel %vm219, 1, 0
      %v253 = vsel %vm220, 1, 0
      %vm254 = vcmp.eq.s32.totalorder %v252, 1
      %vm255 = vcmp.eq.s32.totalorder %v253, 1
      %v256 = vsel %vm254, %v248, 0.0
      %v257 = vsel %vm255, %v244, 0.0
      %v258 = vsel %vm254, %v249, 0.0
      %v259 = vsel %vm255, %v245, 0.0
      %v260 = vsel %vm254, %v250, 0.0
      %v261 = vsel %vm255, %v246, 0.0
      %v262 = vsel %vm254, %v251, 0.0
      %v263 = vsel %vm255, %v247, 0.0
      %v264 = vpack.c.bf16 %v258, %v256
      %v265 = vpack.c.bf16 %v259, %v257
      %v266 = vpack.c.bf16 %v262, %v260
      %v267 = vpack.c.bf16 %v263, %v261
      %268 = vst [vmem:[#allocation2] sm:$0xff] %v264
      %269 = vst [vmem:[#allocation2 + $0x8] sm:$0xff] %v265
      %270 = vst [vmem:[#allocation2 + $0x10] sm:$0xff] %v266
      %271 = vst [vmem:[#allocation2 + $0x18] sm:$0xff] %v267
      %272 = vrot.lane.b32.xlu0 %v172, 16
      %v273 = vpop.permute.xlu0 %272
      %274 = vrot.lane.b32.xlu0 %v174, 16
      %v275 = vpop.permute.xlu0 %274
      %276 = vrot.lane.b32.xlu0 %v176, 16
      %v277 = vpop.permute.xlu0 %276
      %278 = vrot.lane.b32.xlu0 %v178, 16
      %v279 = vpop.permute.xlu0 %278
      %280 = vrot.lane.b32.xlu0 %v173, 16
      %v281 = vpop.permute.xlu0 %280
      %282 = vrot.lane.b32.xlu0 %v175, 16
      %v283 = vpop.permute.xlu0 %282
      %284 = vrot.lane.b32.xlu0 %v177, 16
      %v285 = vpop.permute.xlu0 %284
      %286 = vrot.lane.b32.xlu0 %v179, 16
      %v287 = vpop.permute.xlu0 %286
      %vm288 = vcmp.lt.s32.totalorder %v185, 16
      %v289 = vsel %vm288, %v273, %v281
      %v290 = vsel %vm288, %v275, %v283
      %v291 = vsel %vm288, %v277, %v285
      %v292 = vsel %vm288, %v279, %v287
      %v293 = vsel %vm288, %v281, %v273
      %v294 = vsel %vm288, %v283, %v275
      %v295 = vsel %vm288, %v285, %v277
      %v296 = vsel %vm288, %v287, %v279
      %v297 = vsel %vm211, 1, 0
      %v298 = vsel %vm212, 1, 0
      %vm299 = vcmp.eq.s32.totalorder %v297, 1
      %vm300 = vcmp.eq.s32.totalorder %v298, 1
      %v301 = vsel %vm299, %v293, 0.0
      %v302 = vsel %vm300, %v289, 0.0
      %v303 = vsel %vm299, %v294, 0.0
      %v304 = vsel %vm300, %v290, 0.0
      %v305 = vsel %vm299, %v295, 0.0
      %v306 = vsel %vm300, %v291, 0.0
      %v307 = vsel %vm299, %v296, 0.0
      %v308 = vsel %vm300, %v292, 0.0
      %v309 = vpack.c.bf16 %v303, %v301
      %v310 = vpack.c.bf16 %v304, %v302
      %v311 = vpack.c.bf16 %v307, %v305
      %v312 = vpack.c.bf16 %v308, %v306
      %313 = vst [vmem:[#allocation2 + $0x20] sm:$0xff] %v309
      %314 = vst [vmem:[#allocation2 + $0x28] sm:$0xff] %v310
      %315 = vst [vmem:[#allocation2 + $0x30] sm:$0xff] %v311
      %316 = vst [vmem:[#allocation2 + $0x38] sm:$0xff] %v312
      %317 = vrot.lane.b32.xlu0 %v172, 15
      %v318 = vpop.permute.xlu0 %317
      %319 = vrot.lane.b32.xlu0 %v174, 15
      %v320 = vpop.permute.xlu0 %319
      %321 = vrot.lane.b32.xlu0 %v176, 15
      %v322 = vpop.permute.xlu0 %321
      %323 = vrot.lane.b32.xlu0 %v178, 15
      %v324 = vpop.permute.xlu0 %323
      %325 = vrot.lane.b32.xlu0 %v173, 15
      %v326 = vpop.permute.xlu0 %325
      %327 = vrot.lane.b32.xlu0 %v175, 15
      %v328 = vpop.permute.xlu0 %327
      %329 = vrot.lane.b32.xlu0 %v177, 15
      %v330 = vpop.permute.xlu0 %329
      %331 = vrot.lane.b32.xlu0 %v179, 15
      %v332 = vpop.permute.xlu0 %331
      %vm333 = vcmp.lt.s32.totalorder %v185, 15
      %v334 = vsel %vm333, %v318, %v326
      %v335 = vsel %vm333, %v320, %v328
      %v336 = vsel %vm333, %v322, %v330
      %v337 = vsel %vm333, %v324, %v332
      %v338 = vsel %vm333, %v326, %v318
      %v339 = vsel %vm333, %v328, %v320
      %v340 = vsel %vm333, %v330, %v322
      %v341 = vsel %vm333, %v332, %v324
      %v342 = vsel %vm221, 1, 0
      %v343 = vsel %vm222, 1, 0
      %vm344 = vcmp.eq.s32.totalorder %v342, 1
      %vm345 = vcmp.eq.s32.totalorder %v343, 1
      %v346 = vsel %vm344, %v338, 0.0
      %v347 = vsel %vm345, %v334, 0.0
      %v348 = vsel %vm344, %v339, 0.0
      %v349 = vsel %vm345, %v335, 0.0
      %v350 = vsel %vm344, %v340, 0.0
      %v351 = vsel %vm345, %v336, 0.0
      %v352 = vsel %vm344, %v341, 0.0
      %v353 = vsel %vm345, %v337, 0.0
      %v354 = vpack.c.bf16 %v348, %v346
      %v355 = vpack.c.bf16 %v349, %v347
      %v356 = vpack.c.bf16 %v352, %v350
      %v357 = vpack.c.bf16 %v353, %v351
      %358 = vst [vmem:[#allocation2 + $0x40] sm:$0xff] %v354
      %359 = vst [vmem:[#allocation2 + $0x48] sm:$0xff] %v355
      %360 = vst [vmem:[#allocation2 + $0x50] sm:$0xff] %v356
      %361 = vst [vmem:[#allocation2 + $0x58] sm:$0xff] %v357
      %362 = vrot.lane.b32.xlu0 %v172, 1
      %v363 = vpop.permute.xlu0 %362
      %364 = vrot.lane.b32.xlu0 %v174, 1
      %v365 = vpop.permute.xlu0 %364
      %366 = vrot.lane.b32.xlu0 %v176, 1
      %v367 = vpop.permute.xlu0 %366
      %368 = vrot.lane.b32.xlu0 %v178, 1
      %v369 = vpop.permute.xlu0 %368
      %370 = vrot.lane.b32.xlu0 %v173, 1
      %v371 = vpop.permute.xlu0 %370
      %372 = vrot.lane.b32.xlu0 %v175, 1
      %v373 = vpop.permute.xlu0 %372
      %374 = vrot.lane.b32.xlu0 %v177, 1
      %v375 = vpop.permute.xlu0 %374
      %376 = vrot.lane.b32.xlu0 %v179, 1
      %v377 = vpop.permute.xlu0 %376
      %vm378 = vcmp.lt.s32.totalorder %v185, 1
      %v379 = vsel %vm378, %v363, %v371
      %v380 = vsel %vm378, %v365, %v373
      %v381 = vsel %vm378, %v367, %v375
      %v382 = vsel %vm378, %v369, %v377
      %v383 = vsel %vm378, %v371, %v363
      %v384 = vsel %vm378, %v373, %v365
      %v385 = vsel %vm378, %v375, %v367
      %v386 = vsel %vm378, %v377, %v369
      %v387 = vsel %vm215, 1, 0
      %v388 = vsel %vm216, 1, 0
      %vm389 = vcmp.eq.s32.totalorder %v387, 1
      %vm390 = vcmp.eq.s32.totalorder %v388, 1
      %v391 = vsel %vm389, %v383, 0.0
      %v392 = vsel %vm390, %v379, 0.0
      %v393 = vsel %vm389, %v384, 0.0
      %v394 = vsel %vm390, %v380, 0.0
      %v395 = vsel %vm389, %v385, 0.0
      %v396 = vsel %vm390, %v381, 0.0
      %v397 = vsel %vm389, %v386, 0.0
      %v398 = vsel %vm390, %v382, 0.0
      %v399 = vpack.c.bf16 %v393, %v391
      %v400 = vpack.c.bf16 %v394, %v392
      %v401 = vpack.c.bf16 %v397, %v395
      %v402 = vpack.c.bf16 %v398, %v396
      %403 = vst [vmem:[#allocation2 + $0x60] sm:$0xff] %v399
      %404 = vst [vmem:[#allocation2 + $0x68] sm:$0xff] %v400
      %405 = vst [vmem:[#allocation2 + $0x70] sm:$0xff] %v401
      %406 = vst [vmem:[#allocation2 + $0x78] sm:$0xff] %v402
      %v407 = vpack.c.bf16 %v174, %v172
      %v408 = vpack.c.bf16 %v175, %v173
      %v409 = vpack.c.bf16 %v178, %v176
      %v410 = vpack.c.bf16 %v179, %v177
      %411 = vst [vmem:[#allocation2 + $0x80] sm:$0xff] %v407
      %412 = vst [vmem:[#allocation2 + $0x88] sm:$0xff] %v408
      %413 = vst [vmem:[#allocation2 + $0x90] sm:$0xff] %v409
      %414 = vst [vmem:[#allocation2 + $0x98] sm:$0xff] %v410
      %415 = vrot.lane.b32.xlu0 %v172, 127
      %v416 = vpop.permute.xlu0 %415
      %417 = vrot.lane.b32.xlu0 %v174, 127
      %v418 = vpop.permute.xlu0 %417
      %419 = vrot.lane.b32.xlu0 %v176, 127
      %v420 = vpop.permute.xlu0 %419
      %421 = vrot.lane.b32.xlu0 %v178, 127
      %v422 = vpop.permute.xlu0 %421
      %423 = vrot.lane.b32.xlu0 %v173, 127
      %v424 = vpop.permute.xlu0 %423
      %425 = vrot.lane.b32.xlu0 %v175, 127
      %v426 = vpop.permute.xlu0 %425
      %427 = vrot.lane.b32.xlu0 %v177, 127
      %v428 = vpop.permute.xlu0 %427
      %429 = vrot.lane.b32.xlu0 %v179, 127
      %v430 = vpop.permute.xlu0 %429
      %vm431 = vcmp.lt.s32.totalorder %v185, 127
      %v432 = vsel %vm431, %v416, %v424
      %v433 = vsel %vm431, %v418, %v426
      %v434 = vsel %vm431, %v420, %v428
      %v435 = vsel %vm431, %v422, %v430
      %v436 = vsel %vm431, %v424, %v416
      %v437 = vsel %vm431, %v426, %v418
      %v438 = vsel %vm431, %v428, %v420
      %v439 = vsel %vm431, %v430, %v422
      %v440 = vsel %vm217, 1, 0
      %v441 = vsel %vm218, 1, 0
      %vm442 = vcmp.eq.s32.totalorder %v440, 1
      %vm443 = vcmp.eq.s32.totalorder %v441, 1
      %v444 = vsel %vm442, %v432, 0.0
      %v445 = vsel %vm443, %v436, 0.0
      %v446 = vsel %vm442, %v433, 0.0
      %v447 = vsel %vm443, %v437, 0.0
      %v448 = vsel %vm442, %v434, 0.0
      %v449 = vsel %vm443, %v438, 0.0
      %v450 = vsel %vm442, %v435, 0.0
      %v451 = vsel %vm443, %v439, 0.0
      %v452 = vpack.c.bf16 %v446, %v444
      %v453 = vpack.c.bf16 %v447, %v445
      %v454 = vpack.c.bf16 %v450, %v448
      %v455 = vpack.c.bf16 %v451, %v449
      %456 = vst [vmem:[#allocation2 + $0xa0] sm:$0xff] %v452
      %457 = vst [vmem:[#allocation2 + $0xa8] sm:$0xff] %v453
      %458 = vst [vmem:[#allocation2 + $0xb0] sm:$0xff] %v454
      %459 = vst [vmem:[#allocation2 + $0xb8] sm:$0xff] %v455
      %460 = vrot.lane.b32.xlu0 %v172, 113
      %v461 = vpop.permute.xlu0 %460
      %462 = vrot.lane.b32.xlu0 %v174, 113
      %v463 = vpop.permute.xlu0 %462
      %464 = vrot.lane.b32.xlu0 %v176, 113
      %v465 = vpop.permute.xlu0 %464
      %466 = vrot.lane.b32.xlu0 %v178, 113
      %v467 = vpop.permute.xlu0 %466
      %468 = vrot.lane.b32.xlu0 %v173, 113
      %v469 = vpop.permute.xlu0 %468
      %470 = vrot.lane.b32.xlu0 %v175, 113
      %v471 = vpop.permute.xlu0 %470
      %472 = vrot.lane.b32.xlu0 %v177, 113
      %v473 = vpop.permute.xlu0 %472
      %474 = vrot.lane.b32.xlu0 %v179, 113
      %v475 = vpop.permute.xlu0 %474
      %vm476 = vcmp.lt.s32.totalorder %v185, 113
      %v477 = vsel %vm476, %v461, %v469
      %v478 = vsel %vm476, %v463, %v471
      %v479 = vsel %vm476, %v465, %v473
      %v480 = vsel %vm476, %v467, %v475
      %v481 = vsel %vm476, %v469, %v461
      %v482 = vsel %vm476, %v471, %v463
      %v483 = vsel %vm476, %v473, %v465
      %v484 = vsel %vm476, %v475, %v467
      %v485 = vsel %vm223, 1, 0
      %v486 = vsel %vm224, 1, 0
      %vm487 = vcmp.eq.s32.totalorder %v485, 1
      %vm488 = vcmp.eq.s32.totalorder %v486, 1
      %v489 = vsel %vm487, %v477, 0.0
      %v490 = vsel %vm488, %v481, 0.0
      %v491 = vsel %vm487, %v478, 0.0
      %v492 = vsel %vm488, %v482, 0.0
      %v493 = vsel %vm487, %v479, 0.0
      %v494 = vsel %vm488, %v483, 0.0
      %v495 = vsel %vm487, %v480, 0.0
      %v496 = vsel %vm488, %v484, 0.0
      %v497 = vpack.c.bf16 %v491, %v489
      %v498 = vpack.c.bf16 %v492, %v490
      %v499 = vpack.c.bf16 %v495, %v493
      %v500 = vpack.c.bf16 %v496, %v494
      %501 = vst [vmem:[#allocation2 + $0xc0] sm:$0xff] %v497
      %502 = vst [vmem:[#allocation2 + $0xc8] sm:$0xff] %v498
      %503 = vst [vmem:[#allocation2 + $0xd0] sm:$0xff] %v499
      %504 = vst [vmem:[#allocation2 + $0xd8] sm:$0xff] %v500
      %505 = vrot.lane.b32.xlu0 %v172, 112
      %v506 = vpop.permute.xlu0 %505
      %507 = vrot.lane.b32.xlu0 %v174, 112
      %v508 = vpop.permute.xlu0 %507
      %509 = vrot.lane.b32.xlu0 %v176, 112
      %v510 = vpop.permute.xlu0 %509
      %511 = vrot.lane.b32.xlu0 %v178, 112
      %v512 = vpop.permute.xlu0 %511
      %513 = vrot.lane.b32.xlu0 %v173, 112
      %v514 = vpop.permute.xlu0 %513
      %515 = vrot.lane.b32.xlu0 %v175, 112
      %v516 = vpop.permute.xlu0 %515
      %517 = vrot.lane.b32.xlu0 %v177, 112
      %v518 = vpop.permute.xlu0 %517
      %519 = vrot.lane.b32.xlu0 %v179, 112
      %v520 = vpop.permute.xlu0 %519
      %vm521 = vcmp.lt.s32.totalorder %v185, 112
      %v522 = vsel %vm521, %v506, %v514
      %v523 = vsel %vm521, %v508, %v516
      %v524 = vsel %vm521, %v510, %v518
      %v525 = vsel %vm521, %v512, %v520
      %v526 = vsel %vm521, %v514, %v506
      %v527 = vsel %vm521, %v516, %v508
      %v528 = vsel %vm521, %v518, %v510
      %v529 = vsel %vm521, %v520, %v512
      %v530 = vsel %vm213, 1, 0
      %v531 = vsel %vm214, 1, 0
      %vm532 = vcmp.eq.s32.totalorder %v530, 1
      %vm533 = vcmp.eq.s32.totalorder %v531, 1
      %v534 = vsel %vm532, %v522, 0.0
      %v535 = vsel %vm533, %v526, 0.0
      %v536 = vsel %vm532, %v523, 0.0
      %v537 = vsel %vm533, %v527, 0.0
      %v538 = vsel %vm532, %v524, 0.0
      %v539 = vsel %vm533, %v528, 0.0
      %v540 = vsel %vm532, %v525, 0.0
      %v541 = vsel %vm533, %v529, 0.0
      %v542 = vpack.c.bf16 %v536, %v534
      %v543 = vpack.c.bf16 %v537, %v535
      %v544 = vpack.c.bf16 %v540, %v538
      %v545 = vpack.c.bf16 %v541, %v539
      %546 = vst [vmem:[#allocation2 + $0xe0] sm:$0xff] %v542
      %547 = vst [vmem:[#allocation2 + $0xe8] sm:$0xff] %v543
      %548 = vst [vmem:[#allocation2 + $0xf0] sm:$0xff] %v544
      %549 = vst [vmem:[#allocation2 + $0xf8] sm:$0xff] %v545
      %550 = vrot.lane.b32.xlu0 %v172, 111
      %v551 = vpop.permute.xlu0 %550
      %552 = vrot.lane.b32.xlu0 %v174, 111
      %v553 = vpop.permute.xlu0 %552
      %554 = vrot.lane.b32.xlu0 %v176, 111
      %v555 = vpop.permute.xlu0 %554
      %556 = vrot.lane.b32.xlu0 %v178, 111
      %v557 = vpop.permute.xlu0 %556
      %558 = vrot.lane.b32.xlu0 %v173, 111
      %v559 = vpop.permute.xlu0 %558
      %560 = vrot.lane.b32.xlu0 %v175, 111
      %v561 = vpop.permute.xlu0 %560
      %562 = vrot.lane.b32.xlu0 %v177, 111
      %v563 = vpop.permute.xlu0 %562
      %564 = vrot.lane.b32.xlu0 %v179, 111
      %v565 = vpop.permute.xlu0 %564
      %vm566 = vcmp.lt.s32.totalorder %v185, 111
      %v567 = vsel %vm566, %v551, %v559
      %v568 = vsel %vm566, %v553, %v561
      %v569 = vsel %vm566, %v555, %v563
      %v570 = vsel %vm566, %v557, %v565
      %v571 = vsel %vm566, %v559, %v551
      %v572 = vsel %vm566, %v561, %v553
      %v573 = vsel %vm566, %v563, %v555
      %v574 = vsel %vm566, %v565, %v557
      %v575 = vsel %vm225, 1, 0
      %v576 = vsel %vm226, 1, 0
      %vm577 = vcmp.eq.s32.totalorder %v575, 1
      %vm578 = vcmp.eq.s32.totalorder %v576, 1
      %v579 = vsel %vm577, %v567, 0.0
      %v580 = vsel %vm578, %v571, 0.0
      %v581 = vsel %vm577, %v568, 0.0
      %v582 = vsel %vm578, %v572, 0.0
      %v583 = vsel %vm577, %v569, 0.0
      %v584 = vsel %vm578, %v573, 0.0
      %v585 = vsel %vm577, %v570, 0.0
      %v586 = vsel %vm578, %v574, 0.0
      %v587 = vpack.c.bf16 %v581, %v579
      %v588 = vpack.c.bf16 %v582, %v580
      %v589 = vpack.c.bf16 %v585, %v583
      %v590 = vpack.c.bf16 %v586, %v584
      %591 = vst [vmem:[#allocation2 + $0x100] sm:$0xff] %v587
      %592 = vst [vmem:[#allocation2 + $0x108] sm:$0xff] %v588
      %593 = vst [vmem:[#allocation2 + $0x110] sm:$0xff] %v589
      %594 = vst [vmem:[#allocation2 + $0x118] sm:$0xff] %v590
      %v595 = vld [vmem:[%s1] sm:$0xff]
      %v596 = vld [vmem:[%s1 + $0x8] sm:$0xf]
      %v597 = vld [vmem:[%s1 + $0xc] sm:$0xff]
      %v598 = vld [vmem:[%s1 + $0x14] sm:$0xf]
      %v599 = vld [vmem:[%s1 + $0x18] sm:$0xff]
      %v600 = vld [vmem:[%s1 + $0x20] sm:$0xf]
      %v601 = vld [vmem:[%s1 + $0x24] sm:$0xff]
      %v602 = vld [vmem:[%s1 + $0x2c] sm:$0xf]
      %v603 = vld [vmem:[#allocation2] sm:$0xff]
      %v604 = vld [vmem:[#allocation2 + $0x8] sm:$0xff]
      %v605 = vld [vmem:[#allocation2 + $0x10] sm:$0xff]
      %v606 = vld [vmem:[#allocation2 + $0x18] sm:$0xff]
      %v607 = vld [vmem:[#allocation2 + $0x20] sm:$0xff]
      %v608 = vld [vmem:[#allocation2 + $0x28] sm:$0xff]
      %v609 = vld [vmem:[#allocation2 + $0x30] sm:$0xff]
      %v610 = vld [vmem:[#allocation2 + $0x38] sm:$0xff]
      %v611 = vld [vmem:[#allocation2 + $0x40] sm:$0xff]
      %v612 = vld [vmem:[#allocation2 + $0x48] sm:$0xff]
      %v613 = vld [vmem:[#allocation2 + $0x50] sm:$0xff]
      %v614 = vld [vmem:[#allocation2 + $0x58] sm:$0xff]
      %v615 = vld [vmem:[#allocation2 + $0x60] sm:$0xff]
      %v616 = vld [vmem:[#allocation2 + $0x68] sm:$0xff]
      %v617 = vld [vmem:[#allocation2 + $0x70] sm:$0xff]
      %v618 = vld [vmem:[#allocation2 + $0x78] sm:$0xff]
      %v619 = vld [vmem:[#allocation2 + $0x80] sm:$0xff]
      %v620 = vld [vmem:[#allocation2 + $0x88] sm:$0xff]
      %v621 = vld [vmem:[#allocation2 + $0x90] sm:$0xff]
      %v622 = vld [vmem:[#allocation2 + $0x98] sm:$0xff]
      %v623 = vld [vmem:[#allocation2 + $0xa0] sm:$0xff]
      %v624 = vld [vmem:[#allocation2 + $0xa8] sm:$0xff]
      %v625 = vld [vmem:[#allocation2 + $0xb0] sm:$0xff]
      %v626 = vld [vmem:[#allocation2 + $0xb8] sm:$0xff]
      %v627 = vld [vmem:[#allocation2 + $0xc0] sm:$0xff]
      %v628 = vld [vmem:[#allocation2 + $0xc8] sm:$0xff]
      %v629 = vld [vmem:[#allocation2 + $0xd0] sm:$0xff]
      %v630 = vld [vmem:[#allocation2 + $0xd8] sm:$0xff]
      %v631 = vld [vmem:[#allocation2 + $0xe0] sm:$0xff]
      %v632 = vld [vmem:[#allocation2 + $0xe8] sm:$0xff]
      %v633 = vld [vmem:[#allocation2 + $0xf0] sm:$0xff]
      %v634 = vld [vmem:[#allocation2 + $0xf8] sm:$0xff]
      %v635 = vld [vmem:[#allocation2 + $0x100] sm:$0xff]
      %v636 = vld [vmem:[#allocation2 + $0x108] sm:$0xff]
      %v637 = vld [vmem:[#allocation2 + $0x110] sm:$0xff]
      %v638 = vld [vmem:[#allocation2 + $0x118] sm:$0xff]
      %640 = vset.pattern.permute.xlu0 0
      %641 = vperm.xlu0 %640, %v180
      %v642 = vpop.permute.xlu0 %641
      %645 = vset.pattern.permute.xlu0 0
      %646 = vperm.xlu0 %645, %v181
      %v647 = vpop.permute.xlu0 %646
      %650 = vset.pattern.permute.xlu0 0
      %651 = vperm.xlu0 %650, %v182
      %v652 = vpop.permute.xlu0 %651
      %655 = vset.pattern.permute.xlu0 0
      %656 = vperm.xlu0 %655, %v183
      %v657 = vpop.permute.xlu0 %656
      %v667 = vunpack.c.l.b16 %v595
      %v668 = vunpack.c.h.b16 %v595
      %v669 = vunpack.c.l.b16 %v596
      %v670 = vunpack.c.l.b16 %v597
      %v671 = vunpack.c.h.b16 %v597
      %v672 = vunpack.c.l.b16 %v598
      %v673 = vunpack.c.l.b16 %v599
      %v674 = vunpack.c.h.b16 %v599
      %v675 = vunpack.c.l.b16 %v600
      %v676 = vunpack.c.l.b16 %v601
      %v677 = vunpack.c.h.b16 %v601
      %v678 = vunpack.c.l.b16 %v602
      %v679 = vpack.c.b16 %v670, %v667
      %v680 = vpack.c.b16 %v671, %v668
      %v681 = vpack.c.b16 %v672, %v669
      %v682 = vpack.c.b16 %v676, %v673
      %v683 = vpack.c.b16 %v677, %v674
      %v684 = vpack.c.b16 %v678, %v675
      %vm689 = vcmask 261120
      %v691 = vsel %vm689, %v681, 0
      %v694 = vsel %vm689, %v684, 0
      %696 = vmatprep.subr.bf16.mxu0 %v604
      %697 = vmatpush1.bf16.msra.mxu0 %v603
      %698 = vmatprep.subr.bf16.mxu0 %v606
      %699 = vmatpush1.bf16.msra.mxu0 %v605
      %700 = vmatprep.subr.bf16.mxu0 %v608
      %701 = vmatpush1.bf16.msra.mxu0 %v607
      %702 = vmatprep.subr.bf16.mxu0 %v610
      %703 = vmatpush1.bf16.msra.mxu0 %v609
      %704 = vmatprep.subr.bf16.mxu0 %v612
      %705 = vmatpush1.bf16.msra.mxu0 %v611
      %706 = vmatprep.subr.bf16.mxu0 %v614
      %707 = vmatpush1.bf16.msra.mxu0 %v613
      %708 = vmatprep.subr.bf16.mxu0 %v616
      %709 = vmatpush1.bf16.msra.mxu0 %v615
      %710 = vmatprep.subr.bf16.mxu0 %v618
      %711 = vmatpush1.bf16.msra.mxu0 %v617
      %712 = vmatprep.subr.bf16.mxu0 %v620
      %713 = vmatpush1.bf16.msra.mxu0 %v619
      %714 = vmatprep.subr.bf16.mxu0 %v622
      %715 = vmatpush1.bf16.msra.mxu0 %v621
      %716 = vmatprep.subr.bf16.mxu0 %v624
      %717 = vmatpush1.bf16.msra.mxu0 %v623
      %718 = vmatprep.subr.bf16.mxu0 %v626
      %719 = vmatpush1.bf16.msra.mxu0 %v625
      %720 = vmatprep.subr.bf16.mxu0 %v628
      %721 = vmatpush1.bf16.msra.mxu0 %v627
      %722 = vmatprep.subr.bf16.mxu0 %v630
      %723 = vmatpush1.bf16.msra.mxu0 %v629
      %724 = vmatprep.subr.bf16.mxu0 %v632
      %725 = vmatpush1.bf16.msra.mxu0 %v631
      %726 = vmatprep.subr.bf16.mxu0 %v634
      %727 = vmatpush1.bf16.msra.mxu0 %v633
      %728 = vmatprep.mubr.bf16.mxu0 %v680
      %729 = vmatmul.mubr.bf16.gmra.mrb[0].mxu0 %v679
      %v730 = vpop.f32.mrb[0].mxu0
      %v731 = vadd.f32 %v642, %v730
      %v732 = vpop.f32.mrb[0].mxu0
      %v733 = vadd.f32 %v642, %v732
      %v734 = vpop.f32.mrb[0].mxu0
      %v735 = vadd.f32 %v647, %v734
      %v736 = vpop.f32.mrb[0].mxu0
      %v737 = vadd.f32 %v647, %v736
      %738 = vmatprep.mubr.bf16.mxu0 %v683
      %739 = vmatmul.mubr.bf16.gmra.mrb[0].mxu0 %v682
      %v740 = vpop.f32.mrb[0].mxu0
      %v741 = vadd.f32 %v652, %v740
      %v742 = vpop.f32.mrb[0].mxu0
      %v743 = vadd.f32 %v652, %v742
      %v744 = vpop.f32.mrb[0].mxu0
      %v745 = vadd.f32 %v657, %v744
      %v746 = vpop.f32.mrb[0].mxu0
      %v747 = vadd.f32 %v657, %v746
      %748 = vdwg.mxu0
      %749 = vmatprep.subr.bf16.mxu0 %v636
      %750 = vmatpush1.bf16.msra.mxu0 %v635
      %751 = vmatprep.subr.bf16.mxu0 %v638
      %752 = vmatpush1.bf16.msra.mxu0 %v637
      %753 = vmatprep.subr.bf16.mxu0 0
      %754 = vmatpush1.bf16.msra.mxu0 0
      %755 = vmatprep.subr.bf16.mxu0 0
      %756 = vmatpush1.bf16.msra.mxu0 0
      %757 = vmatprep.subr.bf16.mxu0 0
      %758 = vmatpush1.bf16.msra.mxu0 0
      %759 = vmatprep.subr.bf16.mxu0 0
      %760 = vmatpush1.bf16.msra.mxu0 0
      %761 = vmatprep.subr.bf16.mxu0 0
      %762 = vmatpush1.bf16.msra.mxu0 0
      %763 = vmatprep.subr.bf16.mxu0 0
      %764 = vmatpush1.bf16.msra.mxu0 0
      %765 = vmatprep.subr.bf16.mxu0 0
      %766 = vmatpush1.bf16.msra.mxu0 0
      %767 = vmatprep.subr.bf16.mxu0 0
      %768 = vmatpush1.bf16.msra.mxu0 0
      %769 = vmatprep.subr.bf16.mxu0 0
      %770 = vmatpush1.bf16.msra.mxu0 0
      %771 = vmatprep.subr.bf16.mxu0 0
      %772 = vmatpush1.bf16.msra.mxu0 0
      %773 = vmatprep.subr.bf16.mxu0 0
      %774 = vmatpush1.bf16.msra.mxu0 0
      %775 = vmatprep.subr.bf16.mxu0 0
      %776 = vmatpush1.bf16.msra.mxu0 0
      %777 = vmatprep.subr.bf16.mxu0 0
      %778 = vmatpush1.bf16.msra.mxu0 0
      %779 = vmatprep.subr.bf16.mxu0 0
      %780 = vmatpush1.bf16.msra.mxu0 0
      %781 = vmatprep.mubr.bf16.mxu0 0
      %782 = vmatmul.mubr.bf16.gmra.mrb[0].mxu0 %v691
      %v783 = vpop.f32.mrb[0].mxu0
      %v784 = vadd.f32 %v731, %v783
      %v785 = vpop.f32.mrb[0].mxu0
      %v786 = vadd.f32 %v733, %v785
      %v787 = vpop.f32.mrb[0].mxu0
      %v788 = vadd.f32 %v735, %v787
      %v789 = vpop.f32.mrb[0].mxu0
      %v790 = vadd.f32 %v737, %v789
      %791 = vmatprep.mubr.bf16.mxu0 0
      %792 = vmatmul.mubr.bf16.gmra.mrb[0].mxu0 %v694
      %v793 = vpop.f32.mrb[0].mxu0
      %v794 = vadd.f32 %v741, %v793
      %v795 = vpop.f32.mrb[0].mxu0
      %v796 = vadd.f32 %v743, %v795
      %v797 = vpop.f32.mrb[0].mxu0
      %v798 = vadd.f32 %v745, %v797
      %v799 = vpop.f32.mrb[0].mxu0
      %v800 = vadd.f32 %v747, %v799
      %801 = vdwg.mxu0
      %v802 = vmax.f32 %v784, 0.0
      %v803 = vmax.f32 %v786, 0.0
      %v804 = vmax.f32 %v788, 0.0
      %v805 = vmax.f32 %v790, 0.0
      %v806 = vmax.f32 %v794, 0.0
      %v807 = vmax.f32 %v796, 0.0
      %v808 = vmax.f32 %v798, 0.0
      %v809 = vmax.f32 %v800, 0.0
      %810 = vrot.lane.b32.xlu0 %v802, 17
      %v811 = vpop.permute.xlu0 %810
      %812 = vrot.lane.b32.xlu0 %v804, 17
      %v813 = vpop.permute.xlu0 %812
      %814 = vrot.lane.b32.xlu0 %v806, 17
      %v815 = vpop.permute.xlu0 %814
      %816 = vrot.lane.b32.xlu0 %v808, 17
      %v817 = vpop.permute.xlu0 %816
      %818 = vrot.lane.b32.xlu0 %v803, 17
      %v819 = vpop.permute.xlu0 %818
      %820 = vrot.lane.b32.xlu0 %v805, 17
      %v821 = vpop.permute.xlu0 %820
      %822 = vrot.lane.b32.xlu0 %v807, 17
      %v823 = vpop.permute.xlu0 %822
      %824 = vrot.lane.b32.xlu0 %v809, 17
      %v825 = vpop.permute.xlu0 %824
      %v826 = vsel %vm243, %v811, %v819
      %v827 = vsel %vm243, %v813, %v821
      %v828 = vsel %vm243, %v815, %v823
      %v829 = vsel %vm243, %v817, %v825
      %v830 = vsel %vm243, %v819, %v811
      %v831 = vsel %vm243, %v821, %v813
      %v832 = vsel %vm243, %v823, %v815
      %v833 = vsel %vm243, %v825, %v817
      %v834 = vsel %vm254, %v830, 0.0
      %v835 = vsel %vm255, %v826, 0.0
      %v836 = vsel %vm254, %v831, 0.0
      %v837 = vsel %vm255, %v827, 0.0
      %v838 = vsel %vm254, %v832, 0.0
      %v839 = vsel %vm255, %v828, 0.0
      %v840 = vsel %vm254, %v833, 0.0
      %v841 = vsel %vm255, %v829, 0.0
      %v842 = vpack.c.bf16 %v836, %v834
      %v843 = vpack.c.bf16 %v837, %v835
      %v844 = vpack.c.bf16 %v840, %v838
      %v845 = vpack.c.bf16 %v841, %v839
      %846 = vst [vmem:[#allocation2] sm:$0xff] %v842
      %847 = vst [vmem:[#allocation2 + $0x8] sm:$0xff] %v843
      %848 = vst [vmem:[#allocation2 + $0x10] sm:$0xff] %v844
      %849 = vst [vmem:[#allocation2 + $0x18] sm:$0xff] %v845
      %850 = vrot.lane.b32.xlu0 %v802, 16
      %v851 = vpop.permute.xlu0 %850
      %852 = vrot.lane.b32.xlu0 %v804, 16
      %v853 = vpop.permute.xlu0 %852
      %854 = vrot.lane.b32.xlu0 %v806, 16
      %v855 = vpop.permute.xlu0 %854
      %856 = vrot.lane.b32.xlu0 %v808, 16
      %v857 = vpop.permute.xlu0 %856
      %858 = vrot.lane.b32.xlu0 %v803, 16
      %v859 = vpop.permute.xlu0 %858
      %860 = vrot.lane.b32.xlu0 %v805, 16
      %v861 = vpop.permute.xlu0 %860
      %862 = vrot.lane.b32.xlu0 %v807, 16
      %v863 = vpop.permute.xlu0 %862
      %864 = vrot.lane.b32.xlu0 %v809, 16
      %v865 = vpop.permute.xlu0 %864
      %v866 = vsel %vm288, %v851, %v859
      %v867 = vsel %vm288, %v853, %v861
      %v868 = vsel %vm288, %v855, %v863
      %v869 = vsel %vm288, %v857, %v865
      %v870 = vsel %vm288, %v859, %v851
      %v871 = vsel %vm288, %v861, %v853
      %v872 = vsel %vm288, %v863, %v855
      %v873 = vsel %vm288, %v865, %v857
      %v874 = vsel %vm299, %v870, 0.0
      %v875 = vsel %vm300, %v866, 0.0
      %v876 = vsel %vm299, %v871, 0.0
      %v877 = vsel %vm300, %v867, 0.0
      %v878 = vsel %vm299, %v872, 0.0
      %v879 = vsel %vm300, %v868, 0.0
      %v880 = vsel %vm299, %v873, 0.0
      %v881 = vsel %vm300, %v869, 0.0
      %v882 = vpack.c.bf16 %v876, %v874
      %v883 = vpack.c.bf16 %v877, %v875
      %v884 = vpack.c.bf16 %v880, %v878
      %v885 = vpack.c.bf16 %v881, %v879
      %886 = vst [vmem:[#allocation2 + $0x20] sm:$0xff] %v882
      %887 = vst [vmem:[#allocation2 + $0x28] sm:$0xff] %v883
      %888 = vst [vmem:[#allocation2 + $0x30] sm:$0xff] %v884
      %889 = vst [vmem:[#allocation2 + $0x38] sm:$0xff] %v885
      %890 = vrot.lane.b32.xlu0 %v802, 15
      %v891 = vpop.permute.xlu0 %890
      %892 = vrot.lane.b32.xlu0 %v804, 15
      %v893 = vpop.permute.xlu0 %892
      %894 = vrot.lane.b32.xlu0 %v806, 15
      %v895 = vpop.permute.xlu0 %894
      %896 = vrot.lane.b32.xlu0 %v808, 15
      %v897 = vpop.permute.xlu0 %896
      %898 = vrot.lane.b32.xlu0 %v803, 15
      %v899 = vpop.permute.xlu0 %898
      %900 = vrot.lane.b32.xlu0 %v805, 15
      %v901 = vpop.permute.xlu0 %900
      %902 = vrot.lane.b32.xlu0 %v807, 15
      %v903 = vpop.permute.xlu0 %902
      %904 = vrot.lane.b32.xlu0 %v809, 15
      %v905 = vpop.permute.xlu0 %904
      %v906 = vsel %vm333, %v891, %v899
      %v907 = vsel %vm333, %v893, %v901
      %v908 = vsel %vm333, %v895, %v903
      %v909 = vsel %vm333, %v897, %v905
      %v910 = vsel %vm333, %v899, %v891
      %v911 = vsel %vm333, %v901, %v893
      %v912 = vsel %vm333, %v903, %v895
      %v913 = vsel %vm333, %v905, %v897
      %v914 = vsel %vm344, %v910, 0.0
      %v915 = vsel %vm345, %v906, 0.0
      %v916 = vsel %vm344, %v911, 0.0
      %v917 = vsel %vm345, %v907, 0.0
      %v918 = vsel %vm344, %v912, 0.0
      %v919 = vsel %vm345, %v908, 0.0
      %v920 = vsel %vm344, %v913, 0.0
      %v921 = vsel %vm345, %v909, 0.0
      %v922 = vpack.c.bf16 %v916, %v914
      %v923 = vpack.c.bf16 %v917, %v915
      %v924 = vpack.c.bf16 %v920, %v918
      %v925 = vpack.c.bf16 %v921, %v919
      %926 = vst [vmem:[#allocation2 + $0x40] sm:$0xff] %v922
      %927 = vst [vmem:[#allocation2 + $0x48] sm:$0xff] %v923
      %928 = vst [vmem:[#allocation2 + $0x50] sm:$0xff] %v924
      %929 = vst [vmem:[#allocation2 + $0x58] sm:$0xff] %v925
      %930 = vrot.lane.b32.xlu0 %v802, 1
      %v931 = vpop.permute.xlu0 %930
      %932 = vrot.lane.b32.xlu0 %v804, 1
      %v933 = vpop.permute.xlu0 %932
      %934 = vrot.lane.b32.xlu0 %v806, 1
      %v935 = vpop.permute.xlu0 %934
      %936 = vrot.lane.b32.xlu0 %v808, 1
      %v937 = vpop.permute.xlu0 %936
      %938 = vrot.lane.b32.xlu0 %v803, 1
      %v939 = vpop.permute.xlu0 %938
      %940 = vrot.lane.b32.xlu0 %v805, 1
      %v941 = vpop.permute.xlu0 %940
      %942 = vrot.lane.b32.xlu0 %v807, 1
      %v943 = vpop.permute.xlu0 %942
      %944 = vrot.lane.b32.xlu0 %v809, 1
      %v945 = vpop.permute.xlu0 %944
      %v946 = vsel %vm378, %v931, %v939
      %v947 = vsel %vm378, %v933, %v941
      %v948 = vsel %vm378, %v935, %v943
      %v949 = vsel %vm378, %v937, %v945
      %v950 = vsel %vm378, %v939, %v931
      %v951 = vsel %vm378, %v941, %v933
      %v952 = vsel %vm378, %v943, %v935
      %v953 = vsel %vm378, %v945, %v937
      %v954 = vsel %vm389, %v950, 0.0
      %v955 = vsel %vm390, %v946, 0.0
      %v956 = vsel %vm389, %v951, 0.0
      %v957 = vsel %vm390, %v947, 0.0
      %v958 = vsel %vm389, %v952, 0.0
      %v959 = vsel %vm390, %v948, 0.0
      %v960 = vsel %vm389, %v953, 0.0
      %v961 = vsel %vm390, %v949, 0.0
      %v962 = vpack.c.bf16 %v956, %v954
      %v963 = vpack.c.bf16 %v957, %v955
      %v964 = vpack.c.bf16 %v960, %v958
      %v965 = vpack.c.bf16 %v961, %v959
      %966 = vst [vmem:[#allocation2 + $0x60] sm:$0xff] %v962
      %967 = vst [vmem:[#allocation2 + $0x68] sm:$0xff] %v963
      %968 = vst [vmem:[#allocation2 + $0x70] sm:$0xff] %v964
      %969 = vst [vmem:[#allocation2 + $0x78] sm:$0xff] %v965
      %v970 = vpack.c.bf16 %v804, %v802
      %v971 = vpack.c.bf16 %v805, %v803
      %v972 = vpack.c.bf16 %v808, %v806
      %v973 = vpack.c.bf16 %v809, %v807
      %974 = vst [vmem:[#allocation2 + $0x80] sm:$0xff] %v970
      %975 = vst [vmem:[#allocation2 + $0x88] sm:$0xff] %v971
      %976 = vst [vmem:[#allocation2 + $0x90] sm:$0xff] %v972
      %977 = vst [vmem:[#allocation2 + $0x98] sm:$0xff] %v973
      %978 = vrot.lane.b32.xlu0 %v802, 127
      %v979 = vpop.permute.xlu0 %978
      %980 = vrot.lane.b32.xlu0 %v804, 127
      %v981 = vpop.permute.xlu0 %980
      %982 = vrot.lane.b32.xlu0 %v806, 127
      %v983 = vpop.permute.xlu0 %982
      %984 = vrot.lane.b32.xlu0 %v808, 127
      %v985 = vpop.permute.xlu0 %984
      %986 = vrot.lane.b32.xlu0 %v803, 127
      %v987 = vpop.permute.xlu0 %986
      %988 = vrot.lane.b32.xlu0 %v805, 127
      %v989 = vpop.permute.xlu0 %988
      %990 = vrot.lane.b32.xlu0 %v807, 127
      %v991 = vpop.permute.xlu0 %990
      %992 = vrot.lane.b32.xlu0 %v809, 127
      %v993 = vpop.permute.xlu0 %992
      %v994 = vsel %vm431, %v979, %v987
      %v995 = vsel %vm431, %v981, %v989
      %v996 = vsel %vm431, %v983, %v991
      %v997 = vsel %vm431, %v985, %v993
      %v998 = vsel %vm431, %v987, %v979
      %v999 = vsel %vm431, %v989, %v981
      %v1000 = vsel %vm431, %v991, %v983
      %v1001 = vsel %vm431, %v993, %v985
      %v1002 = vsel %vm442, %v994, 0.0
      %v1003 = vsel %vm443, %v998, 0.0
      %v1004 = vsel %vm442, %v995, 0.0
      %v1005 = vsel %vm443, %v999, 0.0
      %v1006 = vsel %vm442, %v996, 0.0
      %v1007 = vsel %vm443, %v1000, 0.0
      %v1008 = vsel %vm442, %v997, 0.0
      %v1009 = vsel %vm443, %v1001, 0.0
      %v1010 = vpack.c.bf16 %v1004, %v1002
      %v1011 = vpack.c.bf16 %v1005, %v1003
      %v1012 = vpack.c.bf16 %v1008, %v1006
      %v1013 = vpack.c.bf16 %v1009, %v1007
      %1014 = vst [vmem:[#allocation2 + $0xa0] sm:$0xff] %v1010
      %1015 = vst [vmem:[#allocation2 + $0xa8] sm:$0xff] %v1011
      %1016 = vst [vmem:[#allocation2 + $0xb0] sm:$0xff] %v1012
      %1017 = vst [vmem:[#allocation2 + $0xb8] sm:$0xff] %v1013
      %1018 = vrot.lane.b32.xlu0 %v802, 113
      %v1019 = vpop.permute.xlu0 %1018
      %1020 = vrot.lane.b32.xlu0 %v804, 113
      %v1021 = vpop.permute.xlu0 %1020
      %1022 = vrot.lane.b32.xlu0 %v806, 113
      %v1023 = vpop.permute.xlu0 %1022
      %1024 = vrot.lane.b32.xlu0 %v808, 113
      %v1025 = vpop.permute.xlu0 %1024
      %1026 = vrot.lane.b32.xlu0 %v803, 113
      %v1027 = vpop.permute.xlu0 %1026
      %1028 = vrot.lane.b32.xlu0 %v805, 113
      %v1029 = vpop.permute.xlu0 %1028
      %1030 = vrot.lane.b32.xlu0 %v807, 113
      %v1031 = vpop.permute.xlu0 %1030
      %1032 = vrot.lane.b32.xlu0 %v809, 113
      %v1033 = vpop.permute.xlu0 %1032
      %v1034 = vsel %vm476, %v1019, %v1027
      %v1035 = vsel %vm476, %v1021, %v1029
      %v1036 = vsel %vm476, %v1023, %v1031
      %v1037 = vsel %vm476, %v1025, %v1033
      %v1038 = vsel %vm476, %v1027, %v1019
      %v1039 = vsel %vm476, %v1029, %v1021
      %v1040 = vsel %vm476, %v1031, %v1023
      %v1041 = vsel %vm476, %v1033, %v1025
      %v1042 = vsel %vm487, %v1034, 0.0
      %v1043 = vsel %vm488, %v1038, 0.0
      %v1044 = vsel %vm487, %v1035, 0.0
      %v1045 = vsel %vm488, %v1039, 0.0
      %v1046 = vsel %vm487, %v1036, 0.0
      %v1047 = vsel %vm488, %v1040, 0.0
      %v1048 = vsel %vm487, %v1037, 0.0
      %v1049 = vsel %vm488, %v1041, 0.0
      %v1050 = vpack.c.bf16 %v1044, %v1042
      %v1051 = vpack.c.bf16 %v1045, %v1043
      %v1052 = vpack.c.bf16 %v1048, %v1046
      %v1053 = vpack.c.bf16 %v1049, %v1047
      %1054 = vst [vmem:[#allocation2 + $0xc0] sm:$0xff] %v1050
      %1055 = vst [vmem:[#allocation2 + $0xc8] sm:$0xff] %v1051
      %1056 = vst [vmem:[#allocation2 + $0xd0] sm:$0xff] %v1052
      %1057 = vst [vmem:[#allocation2 + $0xd8] sm:$0xff] %v1053
      %1058 = vrot.lane.b32.xlu0 %v802, 112
      %v1059 = vpop.permute.xlu0 %1058
      %1060 = vrot.lane.b32.xlu0 %v804, 112
      %v1061 = vpop.permute.xlu0 %1060
      %1062 = vrot.lane.b32.xlu0 %v806, 112
      %v1063 = vpop.permute.xlu0 %1062
      %1064 = vrot.lane.b32.xlu0 %v808, 112
      %v1065 = vpop.permute.xlu0 %1064
      %1066 = vrot.lane.b32.xlu0 %v803, 112
      %v1067 = vpop.permute.xlu0 %1066
      %1068 = vrot.lane.b32.xlu0 %v805, 112
      %v1069 = vpop.permute.xlu0 %1068
      %1070 = vrot.lane.b32.xlu0 %v807, 112
      %v1071 = vpop.permute.xlu0 %1070
      %1072 = vrot.lane.b32.xlu0 %v809, 112
      %v1073 = vpop.permute.xlu0 %1072
      %v1074 = vsel %vm521, %v1059, %v1067
      %v1075 = vsel %vm521, %v1061, %v1069
      %v1076 = vsel %vm521, %v1063, %v1071
      %v1077 = vsel %vm521, %v1065, %v1073
      %v1078 = vsel %vm521, %v1067, %v1059
      %v1079 = vsel %vm521, %v1069, %v1061
      %v1080 = vsel %vm521, %v1071, %v1063
      %v1081 = vsel %vm521, %v1073, %v1065
      %v1082 = vsel %vm532, %v1074, 0.0
      %v1083 = vsel %vm533, %v1078, 0.0
      %v1084 = vsel %vm532, %v1075, 0.0
      %v1085 = vsel %vm533, %v1079, 0.0
      %v1086 = vsel %vm532, %v1076, 0.0
      %v1087 = vsel %vm533, %v1080, 0.0
      %v1088 = vsel %vm532, %v1077, 0.0
      %v1089 = vsel %vm533, %v1081, 0.0
      %v1090 = vpack.c.bf16 %v1084, %v1082
      %v1091 = vpack.c.bf16 %v1085, %v1083
      %v1092 = vpack.c.bf16 %v1088, %v1086
      %v1093 = vpack.c.bf16 %v1089, %v1087
      %1094 = vst [vmem:[#allocation2 + $0xe0] sm:$0xff] %v1090
      %1095 = vst [vmem:[#allocation2 + $0xe8] sm:$0xff] %v1091
      %1096 = vst [vmem:[#allocation2 + $0xf0] sm:$0xff] %v1092
      %1097 = vst [vmem:[#allocation2 + $0xf8] sm:$0xff] %v1093
      %1098 = vrot.lane.b32.xlu0 %v802, 111
      %v1099 = vpop.permute.xlu0 %1098
      %1100 = vrot.lane.b32.xlu0 %v804, 111
      %v1101 = vpop.permute.xlu0 %1100
      %1102 = vrot.lane.b32.xlu0 %v806, 111
      %v1103 = vpop.permute.xlu0 %1102
      %1104 = vrot.lane.b32.xlu0 %v808, 111
      %v1105 = vpop.permute.xlu0 %1104
      %1106 = vrot.lane.b32.xlu0 %v803, 111
      %v1107 = vpop.permute.xlu0 %1106
      %1108 = vrot.lane.b32.xlu0 %v805, 111
      %v1109 = vpop.permute.xlu0 %1108
      %1110 = vrot.lane.b32.xlu0 %v807, 111
      %v1111 = vpop.permute.xlu0 %1110
      %1112 = vrot.lane.b32.xlu0 %v809, 111
      %v1113 = vpop.permute.xlu0 %1112
      %v1114 = vsel %vm566, %v1099, %v1107
      %v1115 = vsel %vm566, %v1101, %v1109
      %v1116 = vsel %vm566, %v1103, %v1111
      %v1117 = vsel %vm566, %v1105, %v1113
      %v1118 = vsel %vm566, %v1107, %v1099
      %v1119 = vsel %vm566, %v1109, %v1101
      %v1120 = vsel %vm566, %v1111, %v1103
      %v1121 = vsel %vm566, %v1113, %v1105
      %v1122 = vsel %vm577, %v1114, 0.0
      %v1123 = vsel %vm578, %v1118, 0.0
      %v1124 = vsel %vm577, %v1115, 0.0
      %v1125 = vsel %vm578, %v1119, 0.0
      %v1126 = vsel %vm577, %v1116, 0.0
      %v1127 = vsel %vm578, %v1120, 0.0
      %v1128 = vsel %vm577, %v1117, 0.0
      %v1129 = vsel %vm578, %v1121, 0.0
      %v1130 = vpack.c.bf16 %v1124, %v1122
      %v1131 = vpack.c.bf16 %v1125, %v1123
      %v1132 = vpack.c.bf16 %v1128, %v1126
      %v1133 = vpack.c.bf16 %v1129, %v1127
      %1134 = vst [vmem:[#allocation2 + $0x100] sm:$0xff] %v1130
      %1135 = vst [vmem:[#allocation2 + $0x108] sm:$0xff] %v1131
      %1136 = vst [vmem:[#allocation2 + $0x110] sm:$0xff] %v1132
      %1137 = vst [vmem:[#allocation2 + $0x118] sm:$0xff] %v1133
      %v1138 = vld [vmem:[%s1 + $0x30] sm:$0xff]
      %v1139 = vld [vmem:[%s1 + $0x38] sm:$0xf]
      %v1140 = vld [vmem:[%s1 + $0x3c] sm:$0xff]
      %v1141 = vld [vmem:[%s1 + $0x44] sm:$0xf]
      %v1142 = vld [vmem:[%s1 + $0x48] sm:$0xff]
      %v1143 = vld [vmem:[%s1 + $0x50] sm:$0xf]
      %v1144 = vld [vmem:[%s1 + $0x54] sm:$0xff]
      %v1145 = vld [vmem:[%s1 + $0x5c] sm:$0xf]
      %v1146 = vld [vmem:[#allocation2] sm:$0xff]
      %v1147 = vld [vmem:[#allocation2 + $0x8] sm:$0xff]
      %v1148 = vld [vmem:[#allocation2 + $0x10] sm:$0xff]
      %v1149 = vld [vmem:[#allocation2 + $0x18] sm:$0xff]
      %v1150 = vld [vmem:[#allocation2 + $0x20] sm:$0xff]
      %v1151 = vld [vmem:[#allocation2 + $0x28] sm:$0xff]
      %v1152 = vld [vmem:[#allocation2 + $0x30] sm:$0xff]
      %v1153 = vld [vmem:[#allocation2 + $0x38] sm:$0xff]
      %v1154 = vld [vmem:[#allocation2 + $0x40] sm:$0xff]
      %v1155 = vld [vmem:[#allocation2 + $0x48] sm:$0xff]
      %v1156 = vld [vmem:[#allocation2 + $0x50] sm:$0xff]
      %v1157 = vld [vmem:[#allocation2 + $0x58] sm:$0xff]
      %v1158 = vld [vmem:[#allocation2 + $0x60] sm:$0xff]
      %v1159 = vld [vmem:[#allocation2 + $0x68] sm:$0xff]
      %v1160 = vld [vmem:[#allocation2 + $0x70] sm:$0xff]
      %v1161 = vld [vmem:[#allocation2 + $0x78] sm:$0xff]
      %v1162 = vld [vmem:[#allocation2 + $0x80] sm:$0xff]
      %v1163 = vld [vmem:[#allocation2 + $0x88] sm:$0xff]
      %v1164 = vld [vmem:[#allocation2 + $0x90] sm:$0xff]
      %v1165 = vld [vmem:[#allocation2 + $0x98] sm:$0xff]
      %v1166 = vld [vmem:[#allocation2 + $0xa0] sm:$0xff]
      %v1167 = vld [vmem:[#allocation2 + $0xa8] sm:$0xff]
      %v1168 = vld [vmem:[#allocation2 + $0xb0] sm:$0xff]
      %v1169 = vld [vmem:[#allocation2 + $0xb8] sm:$0xff]
      %v1170 = vld [vmem:[#allocation2 + $0xc0] sm:$0xff]
      %v1171 = vld [vmem:[#allocation2 + $0xc8] sm:$0xff]
      %v1172 = vld [vmem:[#allocation2 + $0xd0] sm:$0xff]
      %v1173 = vld [vmem:[#allocation2 + $0xd8] sm:$0xff]
      %v1174 = vld [vmem:[#allocation2 + $0xe0] sm:$0xff]
      %v1175 = vld [vmem:[#allocation2 + $0xe8] sm:$0xff]
      %v1176 = vld [vmem:[#allocation2 + $0xf0] sm:$0xff]
      %v1177 = vld [vmem:[#allocation2 + $0xf8] sm:$0xff]
      %v1178 = vld [vmem:[#allocation2 + $0x100] sm:$0xff]
      %v1179 = vld [vmem:[#allocation2 + $0x108] sm:$0xff]
      %v1180 = vld [vmem:[#allocation2 + $0x110] sm:$0xff]
      %v1181 = vld [vmem:[#allocation2 + $0x118] sm:$0xff]
      %1182 = vset.pattern.permute.xlu0 1
      %1183 = vperm.xlu0 %1182, %v180
      %v1184 = vpop.permute.xlu0 %1183
      %1186 = vset.pattern.permute.xlu0 1
      %1187 = vperm.xlu0 %1186, %v181
      %v1188 = vpop.permute.xlu0 %1187
      %1190 = vset.pattern.permute.xlu0 1
      %1191 = vperm.xlu0 %1190, %v182
      %v1192 = vpop.permute.xlu0 %1191
      %1194 = vset.pattern.permute.xlu0 1
      %1195 = vperm.xlu0 %1194, %v183
      %v1196 = vpop.permute.xlu0 %1195
      %v1206 = vunpack.c.l.b16 %v1138
      %v1207 = vunpack.c.h.b16 %v1138
      %v1208 = vunpack.c.l.b16 %v1139
      %v1209 = vunpack.c.l.b16 %v1140
      %v1210 = vunpack.c.h.b16 %v1140
      %v1211 = vunpack.c.l.b16 %v1141
      %v1212 = vunpack.c.l.b16 %v1142
      %v1213 = vunpack.c.h.b16 %v1142
      %v1214 = vunpack.c.l.b16 %v1143
      %v1215 = vunpack.c.l.b16 %v1144
      %v1216 = vunpack.c.h.b16 %v1144
      %v1217 = vunpack.c.l.b16 %v1145
      %v1218 = vpack.c.b16 %v1209, %v1206
      %v1219 = vpack.c.b16 %v1210, %v1207
      %v1220 = vpack.c.b16 %v1211, %v1208
      %v1221 = vpack.c.b16 %v1215, %v1212
      %v1222 = vpack.c.b16 %v1216, %v1213
      %v1223 = vpack.c.b16 %v1217, %v1214
      %v1229 = vsel %vm689, %v1220, 0
      %v1232 = vsel %vm689, %v1223, 0
      %1234 = vmatprep.subr.bf16.mxu0 %v1147
      %1235 = vmatpush1.bf16.msra.mxu0 %v1146
      %1236 = vmatprep.subr.bf16.mxu0 %v1149
      %1237 = vmatpush1.bf16.msra.mxu0 %v1148
      %1238 = vmatprep.subr.bf16.mxu0 %v1151
      %1239 = vmatpush1.bf16.msra.mxu0 %v1150
      %1240 = vmatprep.subr.bf16.mxu0 %v1153
      %1241 = vmatpush1.bf16.msra.mxu0 %v1152
      %1242 = vmatprep.subr.bf16.mxu0 %v1155
      %1243 = vmatpush1.bf16.msra.mxu0 %v1154
      %1244 = vmatprep.subr.bf16.mxu0 %v1157
      %1245 = vmatpush1.bf16.msra.mxu0 %v1156
      %1246 = vmatprep.subr.bf16.mxu0 %v1159
      %1247 = vmatpush1.bf16.msra.mxu0 %v1158
      %1248 = vmatprep.subr.bf16.mxu0 %v1161
      %1249 = vmatpush1.bf16.msra.mxu0 %v1160
      %1250 = vmatprep.subr.bf16.mxu0 %v1163
      %1251 = vmatpush1.bf16.msra.mxu0 %v1162
      %1252 = vmatprep.subr.bf16.mxu0 %v1165
      %1253 = vmatpush1.bf16.msra.mxu0 %v1164
      %1254 = vmatprep.subr.bf16.mxu0 %v1167
      %1255 = vmatpush1.bf16.msra.mxu0 %v1166
      %1256 = vmatprep.subr.bf16.mxu0 %v1169
      %1257 = vmatpush1.bf16.msra.mxu0 %v1168
      %1258 = vmatprep.subr.bf16.mxu0 %v1171
      %1259 = vmatpush1.bf16.msra.mxu0 %v1170
      %1260 = vmatprep.subr.bf16.mxu0 %v1173
      %1261 = vmatpush1.bf16.msra.mxu0 %v1172
      %1262 = vmatprep.subr.bf16.mxu0 %v1175
      %1263 = vmatpush1.bf16.msra.mxu0 %v1174
      %1264 = vmatprep.subr.bf16.mxu0 %v1177
      %1265 = vmatpush1.bf16.msra.mxu0 %v1176
      %1266 = vmatprep.mubr.bf16.mxu0 %v1219
      %1267 = vmatmul.mubr.bf16.gmra.mrb[0].mxu0 %v1218
      %v1268 = vpop.f32.mrb[0].mxu0
      %v1269 = vadd.f32 %v1184, %v1268
      %v1270 = vpop.f32.mrb[0].mxu0
      %v1271 = vadd.f32 %v1184, %v1270
      %v1272 = vpop.f32.mrb[0].mxu0
      %v1273 = vadd.f32 %v1188, %v1272
      %v1274 = vpop.f32.mrb[0].mxu0
      %v1275 = vadd.f32 %v1188, %v1274
      %1276 = vmatprep.mubr.bf16.mxu0 %v1222
      %1277 = vmatmul.mubr.bf16.gmra.mrb[0].mxu0 %v1221
      %v1278 = vpop.f32.mrb[0].mxu0
      %v1279 = vadd.f32 %v1192, %v1278
      %v1280 = vpop.f32.mrb[0].mxu0
      %v1281 = vadd.f32 %v1192, %v1280
      %v1282 = vpop.f32.mrb[0].mxu0
      %v1283 = vadd.f32 %v1196, %v1282
      %v1284 = vpop.f32.mrb[0].mxu0
      %v1285 = vadd.f32 %v1196, %v1284
      %1286 = vdwg.mxu0
      %1287 = vmatprep.subr.bf16.mxu0 %v1179
      %1288 = vmatpush1.bf16.msra.mxu0 %v1178
      %1289 = vmatprep.subr.bf16.mxu0 %v1181
      %1290 = vmatpush1.bf16.msra.mxu0 %v1180
      %1291 = vmatprep.subr.bf16.mxu0 0
      %1292 = vmatpush1.bf16.msra.mxu0 0
      %1293 = vmatprep.subr.bf16.mxu0 0
      %1294 = vmatpush1.bf16.msra.mxu0 0
      %1295 = vmatprep.subr.bf16.mxu0 0
      %1296 = vmatpush1.bf16.msra.mxu0 0
      %1297 = vmatprep.subr.bf16.mxu0 0
      %1298 = vmatpush1.bf16.msra.mxu0 0
      %1299 = vmatprep.subr.bf16.mxu0 0
      %1300 = vmatpush1.bf16.msra.mxu0 0
      %1301 = vmatprep.subr.bf16.mxu0 0
      %1302 = vmatpush1.bf16.msra.mxu0 0
      %1303 = vmatprep.subr.bf16.mxu0 0
      %1304 = vmatpush1.bf16.msra.mxu0 0
      %1305 = vmatprep.subr.bf16.mxu0 0
      %1306 = vmatpush1.bf16.msra.mxu0 0
      %1307 = vmatprep.subr.bf16.mxu0 0
      %1308 = vmatpush1.bf16.msra.mxu0 0
      %1309 = vmatprep.subr.bf16.mxu0 0
      %1310 = vmatpush1.bf16.msra.mxu0 0
      %1311 = vmatprep.subr.bf16.mxu0 0
      %1312 = vmatpush1.bf16.msra.mxu0 0
      %1313 = vmatprep.subr.bf16.mxu0 0
      %1314 = vmatpush1.bf16.msra.mxu0 0
      %1315 = vmatprep.subr.bf16.mxu0 0
      %1316 = vmatpush1.bf16.msra.mxu0 0
      %1317 = vmatprep.subr.bf16.mxu0 0
      %1318 = vmatpush1.bf16.msra.mxu0 0
      %1319 = vmatprep.mubr.bf16.mxu0 0
      %1320 = vmatmul.mubr.bf16.gmra.mrb[0].mxu0 %v1229
      %v1321 = vpop.f32.mrb[0].mxu0
      %v1322 = vadd.f32 %v1269, %v1321
      %v1323 = vpop.f32.mrb[0].mxu0
      %v1324 = vadd.f32 %v1271, %v1323
      %v1325 = vpop.f32.mrb[0].mxu0
      %v1326 = vadd.f32 %v1273, %v1325
      %v1327 = vpop.f32.mrb[0].mxu0
      %v1328 = vadd.f32 %v1275, %v1327
      %1329 = vmatprep.mubr.bf16.mxu0 0
      %1330 = vmatmul.mubr.bf16.gmra.mrb[0].mxu0 %v1232
      %v1331 = vpop.f32.mrb[0].mxu0
      %v1332 = vadd.f32 %v1279, %v1331
      %v1333 = vpop.f32.mrb[0].mxu0
      %v1334 = vadd.f32 %v1281, %v1333
      %v1335 = vpop.f32.mrb[0].mxu0
      %v1336 = vadd.f32 %v1283, %v1335
      %v1337 = vpop.f32.mrb[0].mxu0
      %v1338 = vadd.f32 %v1285, %v1337
      %1339 = vdwg.mxu0
      %1340 = vset.pattern.permute.xlu0 2
      %1341 = vperm.xlu0 %1340, %v180
      %v1342 = vpop.permute.xlu0 %1341
      %1344 = vset.pattern.permute.xlu0 2
      %1345 = vperm.xlu0 %1344, %v181
      %v1346 = vpop.permute.xlu0 %1345
      %1348 = vset.pattern.permute.xlu0 2
      %1349 = vperm.xlu0 %1348, %v182
      %v1350 = vpop.permute.xlu0 %1349
      %1352 = vset.pattern.permute.xlu0 2
      %1353 = vperm.xlu0 %1352, %v183
      %v1354 = vpop.permute.xlu0 %1353
      %v1356 = vmul.f32 %v172, %v1342
      %v1357 = vmul.f32 %v173, %v1342
      %v1358 = vmul.f32 %v174, %v1346
      %v1359 = vmul.f32 %v175, %v1346
      %v1360 = vmul.f32 %v176, %v1350
      %v1361 = vmul.f32 %v177, %v1350
      %v1362 = vmul.f32 %v178, %v1354
      %v1363 = vmul.f32 %v179, %v1354
      %v1364 = vadd.f32 %v1356, %v1358
      %v1365 = vadd.f32 %v1364, %v1360
      %v1366 = vadd.f32 %v1365, %v1362
      %v1367 = vrot.slane %v1366, 4
      %v1368 = vadd.f32 %v1366, %v1367
      %v1369 = vrot.slane %v1368, 2
      %v1370 = vadd.f32 %v1368, %v1369
      %v1371 = vrot.slane %v1370, 1
      %v1372 = vadd.f32 %v1370, %v1371
      %v1373 = vadd.f32 %v1357, %v1359
      %v1374 = vadd.f32 %v1373, %v1361
      %v1375 = vadd.f32 %v1374, %v1363
      %v1376 = vrot.slane %v1375, 4
      %v1377 = vadd.f32 %v1375, %v1376
      %v1378 = vrot.slane %v1377, 2
      %v1379 = vadd.f32 %v1377, %v1378
      %v1380 = vrot.slane %v1379, 1
      %v1381 = vadd.f32 %v1379, %v1380
      %v1382 = vmax.f32 %v1372, %v1381
      %1383 = vmax.xlane.f32.xlu0 %v1382
      %v1384 = vpop.xlane.xlu0 %1383
      %v1385 = vsub.f32 %v1372, %v1384
      %v1386 = vsub.f32 %v1381, %v1384
      %v1387 = vmul.f32 %v1385, 1.442695
      %v1388 = vpow.pop %v1387
      %v1389 = vmul.f32 %v1386, 1.442695
      %v1390 = vpow.pop %v1389
      %v1391 = vadd.f32 %v1388, %v1390
      %1392 = vadd.xlane.f32.xlu0 %v1391
      %v1393 = vpop.xlane.xlu0 %1392
      %v1394 = vrcp.pop %v1393
      %v1395 = vmul.f32 %v172, %v1388
      %v1396 = vmul.f32 %v173, %v1390
      %v1397 = vmul.f32 %v174, %v1388
      %v1398 = vmul.f32 %v175, %v1390
      %v1399 = vmul.f32 %v176, %v1388
      %v1400 = vmul.f32 %v177, %v1390
      %v1401 = vmul.f32 %v178, %v1388
      %v1402 = vmul.f32 %v179, %v1390
      %v1403 = vadd.f32 %v1395, %v1396
      %1404 = vadd.xlane.f32.xlu0 %v1403
      %v1405 = vpop.xlane.xlu0 %1404
      %v1406 = vadd.f32 %v1397, %v1398
      %1407 = vadd.xlane.f32.xlu0 %v1406
      %v1408 = vpop.xlane.xlu0 %1407
      %v1409 = vadd.f32 %v1399, %v1400
      %1410 = vadd.xlane.f32.xlu0 %v1409
      %v1411 = vpop.xlane.xlu0 %1410
      %v1412 = vadd.f32 %v1401, %v1402
      %1413 = vadd.xlane.f32.xlu0 %v1412
      %v1414 = vpop.xlane.xlu0 %1413
      %v1415 = vmul.f32 %v1405, %v1394
      %v1416 = vmul.f32 %v1408, %v1394
      %v1417 = vmul.f32 %v1411, %v1394
      %v1418 = vmul.f32 %v1414, %v1394
      %v1419 = vmul.f32 %v180, %v1415
      %v1420 = vmul.f32 %v181, %v1416
      %v1421 = vmul.f32 %v182, %v1417
      %v1422 = vmul.f32 %v183, %v1418
      %vm1423 = vcmask 97312
      %v1424 = vsel %vm1423, %v1419, 0.0
      %v1425 = vsel %vm1423, %v1420, 0.0
      %v1426 = vadd.f32 %v1424, %v1425
      %v1427 = vsel %vm1423, %v1421, 0.0
      %v1428 = vadd.f32 %v1426, %v1427
      %v1429 = vsel %vm1423, %v1422, 0.0
      %v1430 = vadd.f32 %v1428, %v1429
      %v1431 = vrot.slane %v1430, 4
      %v1432 = vadd.f32 %v1430, %v1431
      %v1433 = vrot.slane %v1432, 2
      %v1434 = vadd.f32 %v1432, %v1433
      %v1435 = vrot.slane %v1434, 1
      %v1436 = vadd.f32 %v1434, %v1435
      %1437 = vrot.lane.b32.xlu0 %v180, 108
      %v1438 = vpop.permute.xlu0 %1437
      %v1440 = vadd.f32 %v1436, %v1438
      %1442 = vrot.lane.b32.xlu0 %v1440, 124
      %v1443 = vpop.permute.xlu0 %1442
      %vm1445 = vcmask 57344
      %v1446 = vsel %vm1445, %v1443, 0.0
      %1447 = vadd.xlane.f32.xlu0 %v1446
      %v1448 = vpop.xlane.xlu0 %1447
      %v1449 = vrcp.pop 8.0
      %v1450 = vmul.f32 %v1448, %v1449
      %v1451 = vsub.f32 %v1440, %v1450
      %v1452 = vmul.f32 %v1451, %v1451
      %1454 = vrot.lane.b32.xlu0 %v1452, 124
      %v1455 = vpop.permute.xlu0 %1454
      %v1457 = vsel %vm1445, %v1455, 0.0
      %1458 = vadd.xlane.f32.xlu0 %v1457
      %v1459 = vpop.xlane.xlu0 %1458
      %v1460 = vmul.f32 %v1459, %v1449
      %v1461 = vadd.f32 %v1460, 1e-05
      %v1462 = vrsqrt.pop %v1461
      %v1463 = vmul.f32 %v1451, %v1462
      %v1464 = vrot.slane %v180, 1
      %1465 = vrot.lane.b32.xlu0 %v1464, 108
      %v1466 = vpop.permute.xlu0 %1465
      %v1468 = vmul.f32 %v1463, %v1466
      %v1469 = vrot.slane %v180, 2
      %1470 = vrot.lane.b32.xlu0 %v1469, 108
      %v1471 = vpop.permute.xlu0 %1470
      %v1473 = vadd.f32 %v1468, %v1471
      %v1474 = vmax.f32 %v1473, 0.0
      %v1475 = vlaneseq
      %v1476 = vshrl.u32 %v1475, 7
      %v1477 = vsub.s32 0, %v1476
      %v1478 = vrot.slane %v1474, %v1477
      %1480 = vrot.lane.b32.xlu0 %v1478, 8
      %v1481 = vpop.permute.xlu0 %1480
      %v1483 = vmul.f32 %v180, %v1481
      %v1484 = vmul.f32 %v181, %v1481
      %v1485 = vmul.f32 %v182, %v1481
      %v1486 = vmul.f32 %v183, %v1481
      %1491 = vrot.lane.b32.xlu0 %v1483, 116
      %v1492 = vpop.permute.xlu0 %1491
      %1493 = vrot.lane.b32.xlu0 %v1484, 116
      %v1494 = vpop.permute.xlu0 %1493
      %1495 = vrot.lane.b32.xlu0 %v1485, 116
      %v1496 = vpop.permute.xlu0 %1495
      %1497 = vrot.lane.b32.xlu0 %v1486, 116
      %v1498 = vpop.permute.xlu0 %1497
      %vm1503 = vcmask 64512
      %v1504 = vsel %vm1503, %v1492, 0.0
      %1505 = vadd.xlane.f32.xlu0 %v1504
      %v1506 = vpop.xlane.xlu0 %1505
      %v1507 = vsel %vm1503, %v1494, 0.0
      %1508 = vadd.xlane.f32.xlu0 %v1507
      %v1509 = vpop.xlane.xlu0 %1508
      %v1510 = vsel %vm1503, %v1496, 0.0
      %1511 = vadd.xlane.f32.xlu0 %v1510
      %v1512 = vpop.xlane.xlu0 %1511
      %v1513 = vsel %vm1503, %v1498, 0.0
      %1514 = vadd.xlane.f32.xlu0 %v1513
      %v1515 = vpop.xlane.xlu0 %1514
      %v1516 = vadd.f32 %v1506, %v180
      %v1517 = vadd.f32 %v1509, %v181
      %v1518 = vadd.f32 %v1512, %v182
      %v1519 = vadd.f32 %v1515, %v183
      %v1520 = vadd.f32 %v1322, %v1324
      %1521 = vadd.xlane.f32.xlu0 %v1520
      %v1522 = vpop.xlane.xlu0 %1521
      %v1523 = vadd.f32 %v1326, %v1328
      %1524 = vadd.xlane.f32.xlu0 %v1523
      %v1525 = vpop.xlane.xlu0 %1524
      %v1526 = vadd.f32 %v1332, %v1334
      %1527 = vadd.xlane.f32.xlu0 %v1526
      %v1528 = vpop.xlane.xlu0 %1527
      %v1529 = vadd.f32 %v1336, %v1338
      %1530 = vadd.xlane.f32.xlu0 %v1529
      %v1531 = vpop.xlane.xlu0 %1530
      %v1532 = vrcp.pop 256.0
      %v1533 = vmul.f32 %v1522, %v1532
      %v1534 = vmul.f32 %v1525, %v1532
      %v1535 = vmul.f32 %v1528, %v1532
      %v1536 = vmul.f32 %v1531, %v1532
      %v1537 = vmul.f32 %v180, %v1533
      %v1538 = vmul.f32 %v181, %v1534
      %v1539 = vmul.f32 %v182, %v1535
      %v1540 = vmul.f32 %v183, %v1536
      %vm1541 = vcmask 179360
      %v1542 = vsel %vm1541, %v1537, 0.0
      %v1543 = vsel %vm1541, %v1538, 0.0
      %v1544 = vadd.f32 %v1542, %v1543
      %v1545 = vsel %vm1541, %v1539, 0.0
      %v1546 = vadd.f32 %v1544, %v1545
      %v1547 = vsel %vm1541, %v1540, 0.0
      %v1548 = vadd.f32 %v1546, %v1547
      %v1549 = vrot.slane %v1548, 4
      %v1550 = vadd.f32 %v1548, %v1549
      %v1551 = vrot.slane %v1550, 2
      %v1552 = vadd.f32 %v1550, %v1551
      %v1553 = vrot.slane %v1552, 1
      %v1554 = vadd.f32 %v1552, %v1553
      %v1555 = vmax.f32 %v1554, 0.0
      %1557 = vrot.lane.b32.xlu0 %v1555, 2
      %v1558 = vpop.permute.xlu0 %1557
      %v1560 = vmul.f32 %v180, %v1558
      %v1561 = vmul.f32 %v181, %v1558
      %v1562 = vmul.f32 %v182, %v1558
      %v1563 = vmul.f32 %v183, %v1558
      %1568 = vrot.lane.b32.xlu0 %v1560, 106
      %v1569 = vpop.permute.xlu0 %1568
      %1570 = vrot.lane.b32.xlu0 %v1561, 106
      %v1571 = vpop.permute.xlu0 %1570
      %1572 = vrot.lane.b32.xlu0 %v1562, 106
      %v1573 = vpop.permute.xlu0 %1572
      %1574 = vrot.lane.b32.xlu0 %v1563, 106
      %v1575 = vpop.permute.xlu0 %1574
      %vm1580 = vcmask 15360
      %v1581 = vsel %vm1580, %v1569, 0.0
      %1582 = vadd.xlane.f32.xlu0 %v1581
      %v1583 = vpop.xlane.xlu0 %1582
      %v1584 = vsel %vm1580, %v1571, 0.0
      %1585 = vadd.xlane.f32.xlu0 %v1584
      %v1586 = vpop.xlane.xlu0 %1585
      %v1587 = vsel %vm1580, %v1573, 0.0
      %1588 = vadd.xlane.f32.xlu0 %v1587
      %v1589 = vpop.xlane.xlu0 %1588
      %v1590 = vsel %vm1580, %v1575, 0.0
      %1591 = vadd.xlane.f32.xlu0 %v1590
      %v1592 = vpop.xlane.xlu0 %1591
      %v1593 = vsub.f32 0.0, %v1583
      %v1594 = vsub.f32 0.0, %v1586
      %v1595 = vsub.f32 0.0, %v1589
      %v1596 = vsub.f32 0.0, %v1592
      %v1597 = vmul.f32 %v1593, 1.442695
      %v1598 = vpow.pop %v1597
      %v1599 = vmul.f32 %v1594, 1.442695
      %v1600 = vpow.pop %v1599
      %v1601 = vmul.f32 %v1595, 1.442695
      %v1602 = vpow.pop %v1601
      %v1603 = vmul.f32 %v1596, 1.442695
      %v1604 = vpow.pop %v1603
      %v1605 = vadd.f32 %v1598, 1.0
      %v1606 = vadd.f32 %v1600, 1.0
      %v1607 = vadd.f32 %v1602, 1.0
      %v1608 = vadd.f32 %v1604, 1.0
      %v1609 = vrcp.pop %v1605
      %v1610 = vrcp.pop %v1606
      %v1611 = vrcp.pop %v1607
      %v1612 = vrcp.pop %v1608
      %v1613 = vmul.f32 %v1322, %v1609
      %v1614 = vmul.f32 %v1324, %v1609
      %v1615 = vmul.f32 %v1326, %v1610
      %v1616 = vmul.f32 %v1328, %v1610
      %v1617 = vmul.f32 %v1332, %v1611
      %v1618 = vmul.f32 %v1334, %v1611
      %v1619 = vmul.f32 %v1336, %v1612
      %v1620 = vmul.f32 %v1338, %v1612
      %v1621 = vadd.f32 %v1613, %v172
      %v1622 = vadd.f32 %v1614, %v173
      %v1623 = vadd.f32 %v1615, %v174
      %v1624 = vadd.f32 %v1616, %v175
      %v1625 = vadd.f32 %v1617, %v176
      %v1626 = vadd.f32 %v1618, %v177
      %v1627 = vadd.f32 %v1619, %v178
      %v1628 = vadd.f32 %v1620, %v179
      %1630 = vset.pattern.permute.xlu0 3
      %1631 = vperm.xlu0 %1630, %v1516
      %v1632 = vpop.permute.xlu0 %1631
      %1635 = vset.pattern.permute.xlu0 3
      %1636 = vperm.xlu0 %1635, %v1517
      %v1637 = vpop.permute.xlu0 %1636
      %1640 = vset.pattern.permute.xlu0 3
      %1641 = vperm.xlu0 %1640, %v1518
      %v1642 = vpop.permute.xlu0 %1641
      %1645 = vset.pattern.permute.xlu0 3
      %1646 = vperm.xlu0 %1645, %v1519
      %v1647 = vpop.permute.xlu0 %1646
      %v1649 = vadd.f32 %v1621, %v1632
      %v1650 = vadd.f32 %v1622, %v1632
      %v1651 = vadd.f32 %v1623, %v1637
      %v1652 = vadd.f32 %v1624, %v1637
      %v1653 = vadd.f32 %v1625, %v1642
      %v1654 = vadd.f32 %v1626, %v1642
      %v1655 = vadd.f32 %v1627, %v1647
      %v1656 = vadd.f32 %v1628, %v1647
      %v1657 = vmax.f32 %v1649, 0.0
      %v1658 = vmax.f32 %v1650, 0.0
      %v1659 = vmax.f32 %v1651, 0.0
      %v1660 = vmax.f32 %v1652, 0.0
      %v1661 = vmax.f32 %v1653, 0.0
      %v1662 = vmax.f32 %v1654, 0.0
      %v1663 = vmax.f32 %v1655, 0.0
      %v1664 = vmax.f32 %v1656, 0.0
      %1665 = vst [vmem:[%s170] sm:$0xff] %v1657
      %1666 = vst [vmem:[%s170 + $0x8] sm:$0xff] %v1658
      %1667 = vst [vmem:[%s170 + $0x10] sm:$0xff] %v1659
      %1668 = vst [vmem:[%s170 + $0x18] sm:$0xff] %v1660
      %1669 = vst [vmem:[%s170 + $0x20] sm:$0xff] %v1661
      %1670 = vst [vmem:[%s170 + $0x28] sm:$0xff] %v1662
      %1671 = vst [vmem:[%s170 + $0x30] sm:$0xff] %v1663
      %1672 = vst [vmem:[%s170 + $0x38] sm:$0xff] %v1664
      %p1673 = scmp.lt.s32.totalorder %s14, 1
      %s1674 = scalar_select %p1673, %s14, 1
      %s1675 = smul.addr %s1674, 8
      %s1676 = smul.addr %s1675, 8
      %s1677 = scalar_lea.vmem %s3, %s1676
      // Predicated region
      $region33: #{basic_block_forward.1} parent=31 // pred_check
        %p1678 = pneg %p100
      $region34: #{basic_block_forward.1} parent=31 // pred_check_branch
        %1680 = sbr.rel (%p1678) target = $region36
      $region35: #{basic_block_forward.1} parent=31 // pred_region
        _
      $region36: #{basic_block_forward.1} parent=31 // pred_fallthru
        _
    $region32: #{basic_block_forward.1} parent=5 // pred_fallthru
      _
    %p1681 = scmp.le.s32.totalorder 2, %s9
    // Predicated region
    $region37: #{basic_block_forward.1} parent=5 // pred_check
      %p1682 = pneg %p1681
    $region38: #{basic_block_forward.1} parent=5 // pred_check_branch
      %1684 = sbr.rel (%p1682) target = $region40
    $region39: #{basic_block_forward.1} parent=5 // pred_region
      %s1685 = ssub.s32 %s9, 2
      // Predicated region
      $region41: #{basic_block_forward.1} parent=39 // pred_check
        %p1686 = pneg %p106
      $region42: #{basic_block_forward.1} parent=39 // pred_check_branch
        %1688 = sbr.rel (%p1686) target = $region44
      $region43: #{basic_block_forward.1} parent=39 // pred_region
        %p1689 = scmp.lt.s32.totalorder %s15, 1
        %s1690 = scalar_select %p1689, %s15, 1
        %s1691 = smul.addr %s1690, 8
        %s1692 = smul.addr %s1691, 8
        %s1693 = scalar_lea.vmem %s3, %s1692
      $region44: #{basic_block_forward.1} parent=39 // pred_fallthru
        _
    $region40: #{basic_block_forward.1} parent=5 // pred_fallthru
      _
  $region6: #{basic_block_forward.1} parent=0 // loop_footer
    %s13 = sadd.s32 1, %s9
  $region7: #{basic_block_forward.1} parent=0 // loop_footer_branch
    %8 = sbr.rel target = $region3
  $region8: #{basic_block_forward.1} parent=0 // loop_exit
    _

</llo_original>
